<compile_context>
chip_gen: v5e
topology: v5e:2x2
jax: 0.10.0
libtpu: 0.0.40
codegen_flags: <defaults>
</compile_context>

<pallas_src>
import functools
import math

import jax
import jax.numpy as jnp
from jax.experimental import pallas as pl
from jax.experimental.pallas import tpu as pltpu

# ----------------------------- synthetic hparams -----------------------------
HIDDEN_SIZE = 32          # hparams['hidden_size']
F0_BIN = 256              # hparams['f0_bin']
F0_MIN = 40.0             # hparams['f0_min']
F0_MAX = 1100.0           # hparams['f0_max']
NUM_PITCH = 300           # pitch_embed = Embedding(300, hidden_size, padding_idx=0)

F0_MEL_MIN = 1127.0 * math.log(1.0 + F0_MIN / 700.0)
F0_MEL_MAX = 1127.0 * math.log(1.0 + F0_MAX / 700.0)
LN2 = math.log(2.0)

TMEL_TILE = 256           # mel frames per grid step (lane-dense, multiple of 128)


def _round_up(x, m):
    return ((x + m - 1) // m) * m


# --------------------------------- kernel ------------------------------------
def _svc_encoder_kernel(tph_pad, table_ref, m2p_ref, f0_ref, dec_ref, f0d_ref):
    # table_ref: (1, H, K_pad) f32 -- columns 0..tph_pad-1: F.pad'ed hubert rows
    #                                 (+ spk folded in), columns tph_pad..: pitch
    #                                 embedding table (128-aligned K).
    # m2p_ref  : (1, 1, T)     i32 -- mel2ph, Tmel on the lane axis
    # f0_ref   : (1, 1, T)     f32
    # dec_ref  : (1, H, T)     f32 -- decoder_inp already in (H, Tmel) layout
    # f0d_ref  : (1, 1, T)     f32
    k_pad = table_ref.shape[2]
    t = m2p_ref.shape[2]

    m2p = m2p_ref[0]                       # (1, T) int32
    f0 = f0_ref[0]                         # (1, T) f32
    pad_mask = m2p == 0                    # (1, T) bool

    # ---- denorm_f0: 2 ** f0, zeroed where mel2ph == 0 ----
    f0_denorm = jnp.where(pad_mask, 0.0, jnp.exp(f0 * jnp.float32(LN2)))
    f0d_ref[0] = f0_denorm

    # ---- f0_to_coarse ----
    f0_mel = 1127.0 * jnp.log(1.0 + f0_denorm / 700.0)
    scaled = (f0_mel - F0_MEL_MIN) * (F0_BIN - 2) / (F0_MEL_MAX - F0_MEL_MIN) + 1.0
    f0_mel = jnp.where(f0_mel > 0.0, scaled, f0_mel)
    f0_mel = jnp.where(f0_mel <= 1.0, 1.0, f0_mel)
    f0_mel = jnp.where(f0_mel > float(F0_BIN - 1), float(F0_BIN - 1), f0_mel)
    pitch = (f0_mel + 0.5).astype(jnp.int32)            # (1, T), values in [1, F0_BIN-1]

    # ---- fused one-hot:  onehot[k, t] = (k == mel2ph[t]) | (k == tph_pad + pitch[t])
    # (the two index ranges never overlap, so OR == sum of the two one-hots)
    k_iota = jax.lax.broadcasted_iota(jnp.int32, (k_pad, t), 0)
    onehot = jnp.logical_or(k_iota == m2p,
                            k_iota == (pitch + tph_pad)).astype(jnp.float32)

    # ---- single MXU gather:  (H, K_pad) @ (K_pad, T) -> (H, T)  (lane-dense)
    #   = gathered_hubert_row + spk_embed + pitch_embedding, per mel frame
    dec = jnp.dot(table_ref[0], onehot, preferred_element_type=jnp.float32)

    # ---- mask by tgt_nonpadding = (mel2ph > 0) ----
    nonpad = jnp.where(pad_mask, 0.0, 1.0)               # (1, T), broadcast over H
    dec_ref[0] = (dec * nonpad).astype(dec_ref.dtype)


# --------------------------------- wrapper ------------------------------------
def svc_encoder_forward(hubert, mel2ph, spk_embed, f0, pitch_table):
    """hubert: (B, Tph, H) f32, mel2ph: (B, Tmel) int32, spk_embed: (B, 1, H),
    f0: (B, Tmel) f32, pitch_table: (NUM_PITCH, H) f32.
    Returns (decoder_inp.transpose(1,2): (B, H, Tmel), f0_denorm: (B, Tmel))."""
    B, Tph, H = hubert.shape
    Tmel = mel2ph.shape[1]

    # F.pad(encoder_out, [0,0,1,0]): prepend a zero row; pad the phoneme axis
    # and the pitch table up to multiples of 128 (clean MXU K, unmasked vregs).
    Tph_pad = _round_up(Tph + 1, 128)
    Np = pitch_table.shape[0]
    Np_pad = _round_up(Np, 128)
    K_pad = Tph_pad + Np_pad
    Tmel_pad = _round_up(Tmel, TMEL_TILE)

    enc_rows = jnp.pad(hubert.astype(jnp.float32),
                       ((0, 0), (1, Tph_pad - Tph - 1), (0, 0)))       # (B, Tph_pad, H)
    # Fold spk_embed into the encoder rows (Tph adds, not Tmel adds); rows only
    # reachable when mel2ph == 0 are zeroed later by the nonpadding mask.
    enc_rows = enc_rows + spk_embed.reshape(B, 1, H).astype(jnp.float32)

    ptab = jnp.pad(pitch_table.astype(jnp.float32), ((0, Np_pad - Np), (0, 0)))
    ptab = jnp.broadcast_to(ptab[None], (B, Np_pad, H))

    # Combined gather table in (B, H, K_pad) layout (lane dim = K_pad).
    table = jnp.swapaxes(jnp.concatenate([enc_rows, ptab], axis=1), 1, 2)

    m2p = jnp.pad(mel2ph.astype(jnp.int32),
                  ((0, 0), (0, Tmel_pad - Tmel)))[:, None, :]          # (B, 1, Tmel_pad)
    f0in = jnp.pad(f0.astype(jnp.float32),
                   ((0, 0), (0, Tmel_pad - Tmel)))[:, None, :]         # (B, 1, Tmel_pad)

    n_t = Tmel_pad // TMEL_TILE

    # TODO(synk): for very large Tph (thousands of phoneme frames) an
    # index-driven gather via scalar prefetch would beat the one-hot matmul;
    # for typical Tph the fused one-hot path is fine and simpler.
    dec, f0d = pl.pallas_call(
        functools.partial(_svc_encoder_kernel, Tph_pad),
        out_shape=(jax.ShapeDtypeStruct((B, H, Tmel_pad), jnp.float32),
                   jax.ShapeDtypeStruct((B, 1, Tmel_pad), jnp.float32)),
        grid_spec=pltpu.PrefetchScalarGridSpec(
            num_scalar_prefetch=0,
            grid=(B, n_t),
            in_specs=[
                # combined table: resident across the Tmel axis
                pl.BlockSpec((1, H, K_pad), lambda b, t: (b, 0, 0)),
                pl.BlockSpec((1, 1, TMEL_TILE), lambda b, t: (b, 0, t)),
                pl.BlockSpec((1, 1, TMEL_TILE), lambda b, t: (b, 0, t)),
            ],
            out_specs=[
                pl.BlockSpec((1, H, TMEL_TILE), lambda b, t: (b, 0, t)),
                pl.BlockSpec((1, 1, TMEL_TILE), lambda b, t: (b, 0, t)),
            ],
        ),
        compiler_params=pltpu.CompilerParams(
            dimension_semantics=("parallel", "parallel")),
    )(table, m2p, f0in)

    return dec[:, :, :Tmel], f0d[:, 0, :Tmel]


# --------------------------- pure-JAX reference -------------------------------
def svc_encoder_reference(hubert, mel2ph, spk_embed, f0, pitch_table):
    B, Tph, H = hubert.shape
    Tmel = mel2ph.shape[1]
    enc_pad = jnp.pad(hubert, ((0, 0), (1, 0), (0, 0)))
    idx = jnp.broadcast_to(mel2ph[..., None], (B, Tmel, H))
    gathered = jnp.take_along_axis(enc_pad, idx, axis=1)
    pad = mel2ph == 0
    f0_denorm = jnp.where(pad, 0.0, 2.0 ** f0)
    f0_mel = 1127.0 * jnp.log(1.0 + f0_denorm / 700.0)
    f0_mel = jnp.where(
        f0_mel > 0.0,
        (f0_mel - F0_MEL_MIN) * (F0_BIN - 2) / (F0_MEL_MAX - F0_MEL_MIN) + 1.0,
        f0_mel)
    f0_mel = jnp.where(f0_mel <= 1.0, 1.0, f0_mel)
    f0_mel = jnp.where(f0_mel > F0_BIN - 1, float(F0_BIN - 1), f0_mel)
    pitch = (f0_mel + 0.5).astype(jnp.int32)
    pitch_emb = pitch_table[pitch]
    nonpad = (mel2ph > 0).astype(jnp.float32)[..., None]
    dec = (gathered + pitch_emb + spk_embed.reshape(B, 1, H)) * nonpad
    return jnp.swapaxes(dec, 1, 2), f0_denorm


# ------------------------------------ main ------------------------------------
if __name__ == "__main__":
    key = jax.random.PRNGKey(0)
    B, Tph, Tmel, H = 2, 8, 16, HIDDEN_SIZE
    k1, k2, k3, k4, k5 = jax.random.split(key, 5)

    hubert = jax.random.normal(k1, (B, Tph, H), jnp.float32)
    mel2ph = jax.random.randint(k2, (B, Tmel), 0, Tph + 1)          # 0 = padding
    f0 = jax.random.uniform(k3, (B, Tmel), jnp.float32, 5.0, 10.0)  # log2(Hz)
    spk_embed = jax.random.normal(k4, (B, 1, H), jnp.float32)

    # deterministic pitch embedding table; padding_idx=0 row is zero
    pitch_table = 0.02 * jax.random.normal(k5, (NUM_PITCH, H), jnp.float32)
    pitch_table = pitch_table.at[0].set(0.0)

    dec, f0_denorm = svc_encoder_forward(hubert, mel2ph, spk_embed, f0, pitch_table)
    dec = jax.block_until_ready(dec)
    f0_denorm = jax.block_until_ready(f0_denorm)

    dec_ref, f0d_ref = svc_encoder_reference(hubert, mel2ph, spk_embed, f0,
                                             pitch_table)
    assert dec.shape == (B, H, Tmel)
    assert f0_denorm.shape == (B, Tmel)
    assert jnp.allclose(dec, dec_ref, rtol=1e-5, atol=1e-5)
    assert jnp.allclose(f0_denorm, f0d_ref, rtol=1e-5, atol=1e-5)

    # TODO(synk): PitchPredictor / mel_out / spk_embed_proj are built in
    # __init__ but never used in SvcEncoder.forward, so they are omitted here.
    print("KERNEL_OK")
</pallas_src>

<mosaic_0001>
module attributes {stable_mosaic.version = 11 : i64} {
  func.func @_svc_encoder_kernel(%arg0: i32, %arg1: i32, %arg2: memref<1x32x512xf32, #tpu.memory_space<vmem>>, %arg3: memref<1x1x256xi32, #tpu.memory_space<vmem>>, %arg4: memref<1x1x256xf32, #tpu.memory_space<vmem>>, %arg5: memref<1x32x256xf32, #tpu.memory_space<vmem>>, %arg6: memref<1x1x256xf32, #tpu.memory_space<vmem>>) attributes {dimension_semantics = [#tpu.dimension_semantics<parallel>, #tpu.dimension_semantics<parallel>], iteration_bounds = array<i64: 2, 1>, scalar_prefetch = 0 : i64, scratch_operands = 0 : i64, tpu.core_type = #tpu.core_type<tc>, window_params = [{transform_indices = @transform_0, window_bounds = array<i64: 1, 32, 512>}, {transform_indices = @transform_1, window_bounds = array<i64: 1, 1, 256>}, {transform_indices = @transform_2, window_bounds = array<i64: 1, 1, 256>}, {transform_indices = @transform_3, window_bounds = array<i64: 1, 32, 256>}, {transform_indices = @transform_4, window_bounds = array<i64: 1, 1, 256>}]} {
    %c0 = arith.constant 0 : index
    %c0_0 = arith.constant 0 : index
    %c0_1 = arith.constant 0 : index
    %0 = vector.load %arg3[%c0, %c0_0, %c0_1] : memref<1x1x256xi32, #tpu.memory_space<vmem>>, vector<1x1x256xi32>
    %1 = vector.shape_cast %0 : vector<1x1x256xi32> to vector<1x256xi32>
    %c0_2 = arith.constant 0 : index
    %c0_3 = arith.constant 0 : index
    %c0_4 = arith.constant 0 : index
    %2 = vector.load %arg4[%c0_2, %c0_3, %c0_4] : memref<1x1x256xf32, #tpu.memory_space<vmem>>, vector<1x1x256xf32>
    %3 = vector.shape_cast %2 : vector<1x1x256xf32> to vector<1x256xf32>
    %c0_i32 = arith.constant 0 : i32
    %4 = vector.broadcast %c0_i32 : i32 to vector<1x256xi32>
    %5 = arith.cmpi eq, %1, %4 : vector<1x256xi32>
    %cst = arith.constant 0.693147182 : f32
    %6 = vector.broadcast %cst : f32 to vector<1x256xf32>
    %7 = arith.mulf %3, %6 : vector<1x256xf32>
    %8 = math.exp %7 : vector<1x256xf32>
    %cst_5 = arith.constant 0.000000e+00 : f32
    %9 = vector.broadcast %cst_5 : f32 to vector<1x256xf32>
    %10 = arith.select %5, %9, %8 : vector<1x256xi1>, vector<1x256xf32>
    %c0_6 = arith.constant 0 : index
    %c0_7 = arith.constant 0 : index
    %c0_8 = arith.constant 0 : index
    %11 = vector.load %arg6[%c0_6, %c0_7, %c0_8] : memref<1x1x256xf32, #tpu.memory_space<vmem>>, vector<1x1x256xf32>
    %12 = vector.shape_cast %11 : vector<1x1x256xf32> to vector<1x256xf32>
    %13 = vector.shape_cast %10 : vector<1x256xf32> to vector<1x1x256xf32>
    tpu.vector_store %arg6[%c0_6, %c0_7, %c0_8], %13 {strides = array<i32>} : memref<1x1x256xf32, #tpu.memory_space<vmem>>, vector<1x1x256xf32>,
    %cst_9 = arith.constant 7.000000e+02 : f32
    %14 = vector.broadcast %cst_9 : f32 to vector<1x256xf32>
    %15 = arith.divf %10, %14 : vector<1x256xf32>
    %cst_10 = arith.constant 1.000000e+00 : f32
    %16 = vector.broadcast %cst_10 : f32 to vector<1x256xf32>
    %17 = arith.addf %16, %15 : vector<1x256xf32>
    %18 = math.log %17 : vector<1x256xf32>
    %cst_11 = arith.constant 1.127000e+03 : f32
    %19 = vector.broadcast %cst_11 : f32 to vector<1x256xf32>
    %20 = arith.mulf %19, %18 : vector<1x256xf32>
    %cst_12 = arith.constant 62.627224 : f32
    %21 = vector.broadcast %cst_12 : f32 to vector<1x256xf32>
    %22 = arith.subf %20, %21 : vector<1x256xf32>
    %cst_13 = arith.constant 2.540000e+02 : f32
    %23 = vector.broadcast %cst_13 : f32 to vector<1x256xf32>
    %24 = arith.mulf %22, %23 : vector<1x256xf32>
    %cst_14 = arith.constant 1001.78101 : f32
    %25 = vector.broadcast %cst_14 : f32 to vector<1x256xf32>
    %26 = arith.divf %24, %25 : vector<1x256xf32>
    %cst_15 = arith.constant 1.000000e+00 : f32
    %27 = vector.broadcast %cst_15 : f32 to vector<1x256xf32>
    %28 = arith.addf %26, %27 : vector<1x256xf32>
    %cst_16 = arith.constant 0.000000e+00 : f32
    %29 = vector.broadcast %cst_16 : f32 to vector<1x256xf32>
    %30 = arith.cmpf ogt, %20, %29 : vector<1x256xf32>
    %31 = arith.select %30, %28, %20 : vector<1x256xi1>, vector<1x256xf32>
    %cst_17 = arith.constant 1.000000e+00 : f32
    %32 = vector.broadcast %cst_17 : f32 to vector<1x256xf32>
    %33 = arith.cmpf ole, %31, %32 : vector<1x256xf32>
    %cst_18 = arith.constant 1.000000e+00 : f32
    %34 = vector.broadcast %cst_18 : f32 to vector<1x256xf32>
    %35 = arith.select %33, %34, %31 : vector<1x256xi1>, vector<1x256xf32>
    %cst_19 = arith.constant 2.550000e+02 : f32
    %36 = vector.broadcast %cst_19 : f32 to vector<1x256xf32>
    %37 = arith.cmpf ogt, %35, %36 : vector<1x256xf32>
    %cst_20 = arith.constant 2.550000e+02 : f32
    %38 = vector.broadcast %cst_20 : f32 to vector<1x256xf32>
    %39 = arith.select %37, %38, %35 : vector<1x256xi1>, vector<1x256xf32>
    %cst_21 = arith.constant 5.000000e-01 : f32
    %40 = vector.broadcast %cst_21 : f32 to vector<1x256xf32>
    %41 = arith.addf %39, %40 : vector<1x256xf32>
    %42 = arith.fptosi %41 : vector<1x256xf32> to vector<1x256xi32>
    %43 = tpu.iota {dimensions = array<i32: 0>} : vector<512x256xi32>
    %44 = vector.broadcast %1 : vector<1x256xi32> to vector<512x256xi32>
    %45 = arith.cmpi eq, %43, %44 : vector<512x256xi32>
    %c128_i32 = arith.constant 128 : i32
    %46 = vector.broadcast %c128_i32 : i32 to vector<1x256xi32>
    %47 = arith.addi %42, %46 : vector<1x256xi32>
    %48 = vector.broadcast %47 : vector<1x256xi32> to vector<512x256xi32>
    %49 = arith.cmpi eq, %43, %48 : vector<512x256xi32>
    %50 = arith.ori %45, %49 : vector<512x256xi1>
    %51 = arith.extui %50 : vector<512x256xi1> to vector<512x256xi32>
    %52 = arith.sitofp %51 : vector<512x256xi32> to vector<512x256xf32>
    %c0_22 = arith.constant 0 : index
    %c0_23 = arith.constant 0 : index
    %c0_24 = arith.constant 0 : index
    %53 = vector.load %arg2[%c0_22, %c0_23, %c0_24] : memref<1x32x512xf32, #tpu.memory_space<vmem>>, vector<1x32x512xf32>
    %54 = vector.shape_cast %53 : vector<1x32x512xf32> to vector<32x512xf32>
    %cst_25 = arith.constant dense<0.000000e+00> : vector<32x256xf32>
    %55 = tpu.matmul %54, %52, %cst_25 {dimension_numbers = #tpu.dot_dimension_numbers<[1], [0], [0], [1], [0, 0, 1, 1], [], []>} : vector<32x512xf32>, vector<512x256xf32>, vector<32x256xf32> -> vector<32x256xf32>
    %cst_26 = arith.constant 0.000000e+00 : f32
    %cst_27 = arith.constant 1.000000e+00 : f32
    %56 = vector.broadcast %cst_26 : f32 to vector<1x256xf32>
    %57 = vector.broadcast %cst_27 : f32 to vector<1x256xf32>
    %58 = arith.select %5, %56, %57 : vector<1x256xi1>, vector<1x256xf32>
    %59 = vector.broadcast %58 : vector<1x256xf32> to vector<32x256xf32>
    %60 = arith.mulf %55, %59 : vector<32x256xf32>
    %c0_28 = arith.constant 0 : index
    %c0_29 = arith.constant 0 : index
    %c0_30 = arith.constant 0 : index
    %61 = vector.load %arg5[%c0_28, %c0_29, %c0_30] : memref<1x32x256xf32, #tpu.memory_space<vmem>>, vector<1x32x256xf32>
    %62 = vector.shape_cast %61 : vector<1x32x256xf32> to vector<32x256xf32>
    %63 = vector.shape_cast %60 : vector<32x256xf32> to vector<1x32x256xf32>
    tpu.vector_store %arg5[%c0_28, %c0_29, %c0_30], %63 {strides = array<i32>} : memref<1x32x256xf32, #tpu.memory_space<vmem>>, vector<1x32x256xf32>,
    return
  }
  func.func @transform_0(%arg0: i32, %arg1: i32) -> (i32, i32, i32) {
    %c0_i32 = arith.constant 0 : i32
    %c0_i32_0 = arith.constant 0 : i32
    %c0_i32_1 = arith.constant 0 : i32
    return %arg0, %c0_i32, %c0_i32_0 : i32, i32, i32
  }
  func.func @transform_1(%arg0: i32, %arg1: i32) -> (i32, i32, i32) {
    %c0_i32 = arith.constant 0 : i32
    %c0_i32_0 = arith.constant 0 : i32
    return %arg0, %c0_i32, %arg1 : i32, i32, i32
  }
  func.func @transform_2(%arg0: i32, %arg1: i32) -> (i32, i32, i32) {
    %c0_i32 = arith.constant 0 : i32
    %c0_i32_0 = arith.constant 0 : i32
    return %arg0, %c0_i32, %arg1 : i32, i32, i32
  }
  func.func @transform_3(%arg0: i32, %arg1: i32) -> (i32, i32, i32) {
    %c0_i32 = arith.constant 0 : i32
    %c0_i32_0 = arith.constant 0 : i32
    return %arg0, %c0_i32, %arg1 : i32, i32, i32
  }
  func.func @transform_4(%arg0: i32, %arg1: i32) -> (i32, i32, i32) {
    %c0_i32 = arith.constant 0 : i32
    %c0_i32_0 = arith.constant 0 : i32
    return %arg0, %c0_i32, %arg1 : i32, i32, i32
  }
}

</mosaic_0001>

<llo_original>
// kernel: tpu_custom_call.1
$region0: #{tpu_custom_call.1}
  #allocation0 [shape = 'u32[]', space=smem, size = 0x4, offset = 0x4, fixed_abs, tag = 'smem constant byte address 0x4 - core index']
  #allocation1 [shape = 'u32[72,128]{1,0:T(1,128)}', space=vmem, size = 0x9000, scoped, tag = 'internal scratch']
  %s0 = inlined_call_operand.hbm [shape: f32[2,32,512], index: 0, kind: input, shape index: {}]
  %s1 = inlined_call_operand.hbm [shape: s32[2,1,256], index: 1, kind: input, shape index: {}]
  %s2 = inlined_call_operand.hbm [shape: f32[2,1,256], index: 2, kind: input, shape index: {}]
  %s3 = inlined_call_operand.hbm [shape: f32[2,32,256], index: 3, kind: output, shape index: {0}]
  %s4 = inlined_call_operand.hbm [shape: f32[2,1,256], index: 4, kind: output, shape index: {1}]
  %5 = xla_tuple %s3, %s4
  %s6 = sld [smem:[#allocation0]]
  $region65: #{tpu_custom_call.1} parent=0
    _
  %s8 = ssub.s32 1, %s6
  %s9 = scalar_select 0, %s8, %s6
  $region1: #{tpu_custom_call.1} parent=0
    #allocation2 [shape = 'u8[131072]{0}', space=vmem, size = 0x20000, scoped, tag = 'input window, operand 0']
    #allocation3 [shape = 's32[2]{0}', space=sflag, size = 0x8, scoped, tag = 'scoped memory for tpu_custom_call.1']
    #allocation4 [shape = 's32[2]{0}', space=sflag, size = 0x8, scoped, tag = 'scoped memory for tpu_custom_call.1']
    #allocation5 [shape = 'u8[2048]{0}', space=vmem, size = 0x800, scoped, tag = 'input window, operand 1']
    #allocation6 [shape = 's32[2]{0}', space=sflag, size = 0x8, scoped, tag = 'scoped memory for tpu_custom_call.1']
    #allocation7 [shape = 'u8[2048]{0}', space=vmem, size = 0x800, scoped, tag = 'input window, operand 2']
    #allocation8 [shape = 'u8[65536]{0}', space=vmem, size = 0x10000, scoped, tag = 'output window, operand 0']
    #allocation9 [shape = 'u8[2048]{0}', space=vmem, size = 0x800, scoped, tag = 'output window, operand 1']
    #allocation10 [shape = 's32[2]{0}', space=sflag, size = 0x8, scoped, tag = 'scoped memory for tpu_custom_call.1']
    %10 = vsyncpa [#allocation3], 0
    %s11 = scalar_lea.sflag [#allocation3], 1
    %12 = vsyncpa %s11, 0
    %13 = vsyncpa [#allocation6], 0
    %s14 = scalar_lea.sflag [#allocation6], 1
    %15 = vsyncpa %s14, 0
    %16 = vsyncpa [#allocation4], 0
    %s17 = scalar_lea.sflag [#allocation4], 1
    %18 = vsyncpa %s17, 0
    %19 = vsyncpa [#allocation10], 0
    %s20 = scalar_lea.sflag [#allocation10], 1
    %21 = vsyncpa %s20, 0
    loop: start=0, step=1, limit=4
    $region2: #{tpu_custom_call.1} parent=1 // loop_pre_header
      _
    $region3: #{tpu_custom_call.1} parent=1 // loop_header
      %s23 = sphi 0, %s27
      %p24 = scmp.ge.s32.totalorder %s23, 4
      %s30 = sphi 0, %s42
      %s31 = sphi 0, %s38
      %s32 = sphi 0, %s30
      %s33 = sphi 0, %s31
      %s34 = sphi 0, %s32
      %s35 = sphi 0, %s33
      %s45 = sphi 0, %s47
      %s48 = sphi 0, %s45
      %s49 = sphi 0, %s48
      %s65 = sphi 0, %s49
      %s73 = sphi 0, %s75
      %s76 = sphi 0, %s73
      %s77 = sphi 0, %s76
      %s93 = sphi 0, %s77
      %s101 = sphi 0, %s103
      %s104 = sphi 0, %s101
      %s105 = sphi 0, %s104
      %s121 = sphi 0, %s105
      %s129 = sphi 0, %s131
      %s132 = sphi 0, %s129
      %s133 = sphi 0, %s132
      %s149 = sphi 0, %s133
      %s157 = sphi 0, %s159
      %s160 = sphi 0, %s157
      %s161 = sphi 0, %s160
      %s177 = sphi 0, %s161
    $region4: #{tpu_custom_call.1} parent=1 // loop_header_branch
      %26 = sbr.rel (%p24) target = $region8
    $region5: #{tpu_custom_call.1} parent=1 // loop_body
      %s28 = ssub.s32 %s23, 1
      %s29 = ssub.s32 %s23, 2
      %s36 = sadd.s32 1, %s31
      %p37 = scmp.ge.s32.totalorder %s36, 1
      %s38 = scalar_select %p37, 0, %s36
      %s39 = sadd.s32 1, %s30
      %s40 = scalar_select %p37, %s39, %s30
      %p41 = scmp.ge.s32.totalorder %s40, 2
      %s42 = scalar_select %p41, 0, %s40
      %s43 = ssub.s32 %s30, %s42
      %p44 = scmp.eq.s32.totalorder %s43, 0
      %s46 = sadd.s32 %s45, 1
      %s47 = scalar_select %p44, %s45, %s46
      %p50 = pneg %p44
      %p51 = scmp.eq.s32.totalorder %s23, 1
      %p52 = por %p50, %p51
      %p53 = scmp.ne.s32.totalorder %s45, %s48
      %p54 = scmp.eq.s32.totalorder %s23, 0
      %p55 = por %p53, %p54
      %p56 = scmp.ne.s32.totalorder %s45, %s48
      %p57 = scmp.eq.s32.totalorder %s28, 1
      %p58 = por %p56, %p57
      %p59 = scmp.ne.s32.totalorder %s48, %s49
      %p60 = scmp.eq.s32.totalorder %s28, 0
      %p61 = por %p59, %p60
      %p62 = scmp.ne.s32.totalorder %s48, %s49
      %p63 = scmp.eq.s32.totalorder %s29, 1
      %p64 = por %p62, %p63
      %p66 = scmp.ne.s32.totalorder %s49, %s65
      %p67 = scmp.eq.s32.totalorder %s29, 0
      %p68 = por %p66, %p67
      %s69 = ssub.s32 %s30, %s42
      %s70 = ssub.s32 %s31, %s38
      %s71 = sor.u32 %s69, %s70
      %p72 = scmp.eq.s32.totalorder %s71, 0
      %s74 = sadd.s32 %s73, 1
      %s75 = scalar_select %p72, %s73, %s74
      %p78 = pneg %p72
      %p79 = scmp.eq.s32.totalorder %s23, 1
      %p80 = por %p78, %p79
      %p81 = scmp.ne.s32.totalorder %s73, %s76
      %p82 = scmp.eq.s32.totalorder %s23, 0
      %p83 = por %p81, %p82
      %p84 = scmp.ne.s32.totalorder %s73, %s76
      %p85 = scmp.eq.s32.totalorder %s28, 1
      %p86 = por %p84, %p85
      %p87 = scmp.ne.s32.totalorder %s76, %s77
      %p88 = scmp.eq.s32.totalorder %s28, 0
      %p89 = por %p87, %p88
      %p90 = scmp.ne.s32.totalorder %s76, %s77
      %p91 = scmp.eq.s32.totalorder %s29, 1
      %p92 = por %p90, %p91
      %p94 = scmp.ne.s32.totalorder %s77, %s93
      %p95 = scmp.eq.s32.totalorder %s29, 0
      %p96 = por %p94, %p95
      %s97 = ssub.s32 %s30, %s42
      %s98 = ssub.s32 %s31, %s38
      %s99 = sor.u32 %s97, %s98
      %p100 = scmp.eq.s32.totalorder %s99, 0
      %s102 = sadd.s32 %s101, 1
      %s103 = scalar_select %p100, %s101, %s102
      %p106 = pneg %p100
      %p107 = scmp.eq.s32.totalorder %s23, 1
      %p108 = por %p106, %p107
      %p109 = scmp.ne.s32.totalorder %s101, %s104
      %p110 = scmp.eq.s32.totalorder %s23, 0
      %p111 = por %p109, %p110
      %p112 = scmp.ne.s32.totalorder %s101, %s104
      %p113 = scmp.eq.s32.totalorder %s28, 1
      %p114 = por %p112, %p113
      %p115 = scmp.ne.s32.totalorder %s104, %s105
      %p116 = scmp.eq.s32.totalorder %s28, 0
      %p117 = por %p115, %p116
      %p118 = scmp.ne.s32.totalorder %s104, %s105
      %p119 = scmp.eq.s32.totalorder %s29, 1
      %p120 = por %p118, %p119
      %p122 = scmp.ne.s32.totalorder %s105, %s121
      %p123 = scmp.eq.s32.totalorder %s29, 0
      %p124 = por %p122, %p123
      %s125 = ssub.s32 %s30, %s42
      %s126 = ssub.s32 %s31, %s38
      %s127 = sor.u32 %s125, %s126
      %p128 = scmp.eq.s32.totalorder %s127, 0
      %s130 = sadd.s32 %s129, 1
      %s131 = scalar_select %p128, %s129, %s130
      %p134 = pneg %p128
      %p135 = scmp.eq.s32.totalorder %s23, 1
      %p136 = por %p134, %p135
      %p137 = scmp.ne.s32.totalorder %s129, %s132
      %p138 = scmp.eq.s32.totalorder %s23, 0
      %p139 = por %p137, %p138
      %p140 = scmp.ne.s32.totalorder %s129, %s132
      %p141 = scmp.eq.s32.totalorder %s28, 1
      %p142 = por %p140, %p141
      %p143 = scmp.ne.s32.totalorder %s132, %s133
      %p144 = scmp.eq.s32.totalorder %s28, 0
      %p145 = por %p143, %p144
      %p146 = scmp.ne.s32.totalorder %s132, %s133
      %p147 = scmp.eq.s32.totalorder %s29, 1
      %p148 = por %p146, %p147
      %p150 = scmp.ne.s32.totalorder %s133, %s149
      %p151 = scmp.eq.s32.totalorder %s29, 0
      %p152 = por %p150, %p151
      %s153 = ssub.s32 %s30, %s42
      %s154 = ssub.s32 %s31, %s38
      %s155 = sor.u32 %s153, %s154
      %p156 = scmp.eq.s32.totalorder %s155, 0
      %s158 = sadd.s32 %s157, 1
      %s159 = scalar_select %p156, %s157, %s158
      %p162 = pneg %p156
      %p163 = scmp.eq.s32.totalorder %s23, 1
      %p164 = por %p162, %p163
      %p165 = scmp.ne.s32.totalorder %s157, %s160
      %p166 = scmp.eq.s32.totalorder %s23, 0
      %p167 = por %p165, %p166
      %p168 = scmp.ne.s32.totalorder %s157, %s160
      %p169 = scmp.eq.s32.totalorder %s28, 1
      %p170 = por %p168, %p169
      %p171 = scmp.ne.s32.totalorder %s160, %s161
      %p172 = scmp.eq.s32.totalorder %s28, 0
      %p173 = por %p171, %p172
      %p174 = scmp.ne.s32.totalorder %s160, %s161
      %p175 = scmp.eq.s32.totalorder %s29, 1
      %p176 = por %p174, %p175
      %p178 = scmp.ne.s32.totalorder %s161, %s177
      %p179 = scmp.eq.s32.totalorder %s29, 0
      %p180 = por %p178, %p179
      %p181 = scmp.le.s32.totalorder 1, %s23
      %p182 = scmp.lt.s32.totalorder %s23, 3
      %p183 = pnand %p181, %p182
      %p184 = pneg %p183
      // Predicated region
      $region9: #{tpu_custom_call.1} parent=5 // pred_check
        _
      $region10: #{tpu_custom_call.1} parent=5 // pred_check_branch
        %186 = sbr.rel (%p183) target = $region12
      $region11: #{tpu_custom_call.1} parent=5 // pred_region
        %s187 = ssub.s32 %s23, 1
      $region12: #{tpu_custom_call.1} parent=5 // pred_fallthru
        _
      %p188 = scmp.lt.s32.totalorder %s23, 2
      // Predicated region
      $region13: #{tpu_custom_call.1} parent=5 // pred_check
        %p189 = pneg %p188
      $region14: #{tpu_custom_call.1} parent=5 // pred_check_branch
        %191 = sbr.rel (%p189) target = $region16
      $region15: #{tpu_custom_call.1} parent=5 // pred_region
        // Predicated region
        $region17: #{tpu_custom_call.1} parent=15 // pred_check
          %p192 = pneg %p55
        $region18: #{tpu_custom_call.1} parent=15 // pred_check_branch
          %194 = sbr.rel (%p192) target = $region20
        $region19: #{tpu_custom_call.1} parent=15 // pred_region
          %s195 = sand.u32 %s45, 1
          %s196 = scalar_lea.sflag [#allocation3], %s195
          %s197 = sand.u32 %s45, 1
          %s198 = smul.addr %s197, 128
          %s199 = scalar_lea.vmem [#allocation2], %s198
          %201 = vsyncadd %s196, 0
          %s202 = smul.addr %s30, 16
          %s203 = smul.addr %s202, 8
          %s204 = scalar_lea.hbm %s0, %s203
          %s205 = sshll.u32 %s204, 4
          %s206 = int_to_ptr.hbm [resolvable:$true] %s205
          %s207 = sshll.u32 %s199, 4
          %s208 = int_to_ptr.vmem [resolvable:$true] %s207
          %213 = dma.hbm_to_vmem [thread:$0]  %s206, 2048, %s208, %s196, 512, 512, 32
        $region20: #{tpu_custom_call.1} parent=15 // pred_fallthru
          _
        // Predicated region
        $region21: #{tpu_custom_call.1} parent=15 // pred_check
          %p214 = pneg %p83
        $region22: #{tpu_custom_call.1} parent=15 // pred_check_branch
          %216 = sbr.rel (%p214) target = $region24
        $region23: #{tpu_custom_call.1} parent=15 // pred_region
          %s217 = sand.u32 %s23, 1
          %s218 = scalar_lea.sflag [#allocation6], %s217
          %s219 = sand.u32 %s73, 1
          %s220 = smul.addr %s219, 2
          %s221 = scalar_lea.vmem [#allocation5], %s220
          %s222 = smul.u32 2, %s31
          %224 = vsyncadd %s218, 0
          %s225 = smul.addr %s30, 2
          %s226 = sadd.s32 %s222, %s225
          %s227 = scalar_lea.hbm %s1, %s226
          %s229 = sshll.u32 %s227, 4
          %s230 = int_to_ptr.hbm [resolvable:$true] %s229
          %s231 = sshll.u32 %s221, 4
          %s232 = int_to_ptr.vmem [resolvable:$true] %s231
          %234 = dma.hbm_to_vmem [thread:$0]  %s230, 32, %s232, %s218
        $region24: #{tpu_custom_call.1} parent=15 // pred_fallthru
          _
        // Predicated region
        $region25: #{tpu_custom_call.1} parent=15 // pred_check
          %p235 = pneg %p111
        $region26: #{tpu_custom_call.1} parent=15 // pred_check_branch
          %237 = sbr.rel (%p235) target = $region28
        $region27: #{tpu_custom_call.1} parent=15 // pred_region
          %s238 = sand.u32 %s23, 1
          %s239 = scalar_lea.sflag [#allocation6], %s238
          %s240 = sand.u32 %s101, 1
          %s241 = smul.addr %s240, 2
          %s242 = scalar_lea.vmem [#allocation7], %s241
          %s243 = smul.u32 2, %s31
          %245 = vsyncadd %s239, 0
          %s246 = smul.addr %s30, 2
          %s247 = sadd.s32 %s243, %s246
          %s248 = scalar_lea.hbm %s2, %s247
          %s250 = sshll.u32 %s248, 4
          %s251 = int_to_ptr.hbm [resolvable:$true] %s250
          %s252 = sshll.u32 %s242, 4
          %s253 = int_to_ptr.vmem [resolvable:$true] %s252
          %255 = dma.hbm_to_vmem [thread:$0]  %s251, 32, %s253, %s239
        $region28: #{tpu_custom_call.1} parent=15 // pred_fallthru
          _
      $region16: #{tpu_custom_call.1} parent=5 // pred_fallthru
        _
      %p256 = scmp.le.s32.totalorder 1, %s23
      %p257 = scmp.lt.s32.totalorder %s23, 3
      %p258 = pnand %p256, %p257
      %p259 = pneg %p258
      // Predicated region
      $region29: #{tpu_custom_call.1} parent=5 // pred_check
        _
      $region30: #{tpu_custom_call.1} parent=5 // pred_check_branch
        %261 = sbr.rel (%p258) target = $region32
      $region31: #{tpu_custom_call.1} parent=5 // pred_region
        %s262 = ssub.s32 %s23, 1
        %s263 = sand.u32 %s48, 1
        %s264 = scalar_lea.sflag [#allocation3], %s263
        %s265 = sand.u32 %s48, 1
        %s266 = smul.addr %s265, 128
        %s267 = scalar_lea.vmem [#allocation2], %s266
        // Predicated region
        $region33: #{tpu_custom_call.1} parent=31 // pred_check
          %p268 = pneg %p61
        $region34: #{tpu_custom_call.1} parent=31 // pred_check_branch
          %270 = sbr.rel (%p268) target = $region36
        $region35: #{tpu_custom_call.1} parent=31 // pred_region
          %272 = dma.done %s264, 2048
        $region36: #{tpu_custom_call.1} parent=31 // pred_fallthru
          _
        %s273 = sand.u32 %s28, 1
        %s274 = scalar_lea.sflag [#allocation6], %s273
        %s275 = sand.u32 %s76, 1
        %s276 = smul.addr %s275, 2
        %s277 = scalar_lea.vmem [#allocation5], %s276
        // Predicated region
        $region37: #{tpu_custom_call.1} parent=31 // pred_check
          %p278 = pneg %p89
        $region38: #{tpu_custom_call.1} parent=31 // pred_check_branch
          %280 = sbr.rel (%p278) target = $region40
        $region39: #{tpu_custom_call.1} parent=31 // pred_region
          %282 = dma.done %s274, 32
        $region40: #{tpu_custom_call.1} parent=31 // pred_fallthru
          _
        %s283 = sand.u32 %s28, 1
        %s284 = scalar_lea.sflag [#allocation6], %s283
        %s285 = sand.u32 %s104, 1
        %s286 = smul.addr %s285, 2
        %s287 = scalar_lea.vmem [#allocation7], %s286
        // Predicated region
        $region41: #{tpu_custom_call.1} parent=31 // pred_check
          %p288 = pneg %p117
        $region42: #{tpu_custom_call.1} parent=31 // pred_check_branch
          %290 = sbr.rel (%p288) target = $region44
        $region43: #{tpu_custom_call.1} parent=31 // pred_region
          %292 = dma.done %s284, 32
        $region44: #{tpu_custom_call.1} parent=31 // pred_fallthru
          _
        %s293 = sand.u32 %s48, 1
        %s294 = scalar_lea.sflag [#allocation3], %s293
        %s295 = sand.u32 %s48, 1
        %s296 = smul.addr %s295, 128
        %s297 = scalar_lea.vmem [#allocation2], %s296
        %p298 = pneg %p61
        %p299 = pneg %p58
        %s300 = sand.u32 %s28, 1
        %s301 = scalar_lea.sflag [#allocation6], %s300
        %s302 = sand.u32 %s76, 1
        %s303 = smul.addr %s302, 2
        %s304 = scalar_lea.vmem [#allocation5], %s303
        %p305 = pneg %p89
        %p306 = pneg %p86
        %s307 = sand.u32 %s28, 1
        %s308 = scalar_lea.sflag [#allocation6], %s307
        %s309 = sand.u32 %s104, 1
        %s310 = smul.addr %s309, 2
        %s311 = scalar_lea.vmem [#allocation7], %s310
        %p312 = pneg %p117
        %p313 = pneg %p114
        %p314 = pneg %p145
        %p315 = pneg %p142
        %s316 = sand.u32 %s132, 1
        %s317 = scalar_lea.sflag [#allocation4], %s316
        %s318 = sand.u32 %s132, 1
        %s319 = smul.addr %s318, 64
        %s320 = scalar_lea.vmem [#allocation8], %s319
        %p321 = pneg %p173
        %p322 = pneg %p170
        %s323 = sand.u32 %s160, 1
        %s324 = scalar_lea.sflag [#allocation10], %s323
        %s325 = sand.u32 %s160, 1
        %s326 = smul.addr %s325, 2
        %s327 = scalar_lea.vmem [#allocation9], %s326
        %s328 = smul.u32 2, %s33
        %s329 = smul.u32 2, %s33
        %s330 = smul.u32 2, %s33
        %s331 = smul.u32 2, %s33
        %v332 = vld [vmem:[%s277] sm:$0x3]
        %v333 = vld [vmem:[%s287] sm:$0x3]
        %vm334 = vcmp.eq.s32.totalorder %v332, 0
        %v335 = vmul.f32 %v333, 0.6931472
        %v336 = vmul.f32 %v335, 1.442695
        %v337 = vpow.pop %v336
        %v338 = vsel %vm334, 0.0, %v337
        %v339 = vlaneseq
        %vm340 = vcmp.ge.s32.totalorder %v339, 0
        %vm341 = vcmp.lt.s32.totalorder %v339, 256
        %vm342 = vmand %vm340, %vm341
        %343 = vst.msk [vmem:[%s327] sm:$0x3] %vm342, %v338
        %v344 = vrcp.pop 700.0
        %v345 = vmul.f32 700.0, %v344
        %v346 = vsub.f32 1.0, %v345
        %v347 = vmul.f32 %v344, %v346
        %v348 = vadd.f32 %v344, %v347
        %vm349 = vweird.f32 %v344
        %v350 = vsel %vm349, %v344, %v348
        %v351 = vmul.f32 %v338, %v350
        %v352 = vadd.f32 %v351, 1.0
        %v353 = vlog2.pop %v352
        %v354 = vmul.f32 %v353, 0.6931472
        %v355 = vmul.f32 %v354, 1127.0
        %v356 = vsub.f32 %v355, 62.627224
        %v357 = vmul.f32 %v356, 254.0
        %v358 = vrcp.pop 1001.781
        %v359 = vmul.f32 1001.781, %v358
        %v360 = vsub.f32 1.0, %v359
        %v361 = vmul.f32 %v358, %v360
        %v362 = vadd.f32 %v358, %v361
        %vm363 = vweird.f32 %v358
        %v364 = vsel %vm363, %v358, %v362
        %v365 = vmul.f32 %v357, %v364
        %v366 = vadd.f32 %v365, 1.0
        %vm367 = vcmp.gt.f32.partialorder %v355, 0.0
        %v368 = vsel %vm367, %v366, %v355
        %vm369 = vcmp.le.f32.partialorder %v368, 1.0
        %v370 = vsel %vm369, 1.0, %v368
        %vm371 = vcmp.gt.f32.partialorder %v370, 255.0
        %v372 = vsel %vm371, 255.0, %v370
        %v373 = vadd.f32 %v372, 0.5
        %v374 = vcvt.f32.s32.to.zero.pseudo %v373
        %v375 = vlaneseq
        %v376 = vshrl.u32 %v375, 7
        %v377 = vadd.s32 %v376, 8
        %v378 = vadd.s32 %v376, 16
        %v379 = vadd.s32 %v376, 24
        %v380 = vadd.s32 %v376, 32
        %v381 = vadd.s32 %v376, 40
        %v382 = vadd.s32 %v376, 48
        %v383 = vadd.s32 %v376, 56
        %v384 = vadd.s32 %v376, 64
        %v385 = vadd.s32 %v376, 72
        %v386 = vadd.s32 %v376, 80
        %v387 = vadd.s32 %v376, 88
        %v388 = vadd.s32 %v376, 96
        %v389 = vadd.s32 %v376, 104
        %v390 = vadd.s32 %v376, 112
        %v391 = vadd.s32 %v376, 120
        %v392 = vadd.s32 %v376, 128
        %v393 = vadd.s32 %v376, 136
        %v394 = vadd.s32 %v376, 144
        %v395 = vadd.s32 %v376, 152
        %v396 = vadd.s32 %v376, 160
        %v397 = vadd.s32 %v376, 168
        %v398 = vadd.s32 %v376, 176
        %v399 = vadd.s32 %v376, 184
        %v400 = vadd.s32 %v376, 192
        %v401 = vadd.s32 %v376, 200
        %v402 = vadd.s32 %v376, 208
        %v403 = vadd.s32 %v376, 216
        %v404 = vadd.s32 %v376, 224
        %v405 = vadd.s32 %v376, 232
        %v406 = vadd.s32 %v376, 240
        %v407 = vadd.s32 %v376, 248
        %v408 = vadd.s32 %v376, 256
        %v409 = vadd.s32 %v376, 264
        %v410 = vadd.s32 %v376, 272
        %v411 = vadd.s32 %v376, 280
        %v412 = vadd.s32 %v376, 288
        %v413 = vadd.s32 %v376, 296
        %v414 = vadd.s32 %v376, 304
        %v415 = vadd.s32 %v376, 312
        %v416 = vadd.s32 %v376, 320
        %v417 = vadd.s32 %v376, 328
        %v418 = vadd.s32 %v376, 336
        %v419 = vadd.s32 %v376, 344
        %v420 = vadd.s32 %v376, 352
        %v421 = vadd.s32 %v376, 360
        %v422 = vadd.s32 %v376, 368
        %v423 = vadd.s32 %v376, 376
        %v424 = vadd.s32 %v376, 384
        %v425 = vadd.s32 %v376, 392
        %v426 = vadd.s32 %v376, 400
        %v427 = vadd.s32 %v376, 408
        %v428 = vadd.s32 %v376, 416
        %v429 = vadd.s32 %v376, 424
        %v430 = vadd.s32 %v376, 432
        %v431 = vadd.s32 %v376, 440
        %v432 = vadd.s32 %v376, 448
        %v433 = vadd.s32 %v376, 456
        %v434 = vadd.s32 %v376, 464
        %v435 = vadd.s32 %v376, 472
        %v436 = vadd.s32 %v376, 480
        %v437 = vadd.s32 %v376, 488
        %v438 = vadd.s32 %v376, 496
        %v439 = vadd.s32 %v376, 504
        %v440 = vperm.slane %v332, 0
        %v441 = vperm.slane %v332, 1
        %vm442 = vcmp.eq.s32.totalorder %v376, %v440
        %vm443 = vcmp.eq.s32.totalorder %v376, %v441
        %vm444 = vcmp.eq.s32.totalorder %v377, %v440
        %vm445 = vcmp.eq.s32.totalorder %v377, %v441
        %vm446 = vcmp.eq.s32.totalorder %v378, %v440
        %vm447 = vcmp.eq.s32.totalorder %v378, %v441
        %vm448 = vcmp.eq.s32.totalorder %v379, %v440
        %vm449 = vcmp.eq.s32.totalorder %v379, %v441
        %vm450 = vcmp.eq.s32.totalorder %v380, %v440
        %vm451 = vcmp.eq.s32.totalorder %v380, %v441
        %vm452 = vcmp.eq.s32.totalorder %v381, %v440
        %vm453 = vcmp.eq.s32.totalorder %v381, %v441
        %vm454 = vcmp.eq.s32.totalorder %v382, %v440
        %vm455 = vcmp.eq.s32.totalorder %v382, %v441
        %vm456 = vcmp.eq.s32.totalorder %v383, %v440
        %vm457 = vcmp.eq.s32.totalorder %v383, %v441
        %vm458 = vcmp.eq.s32.totalorder %v384, %v440
        %vm459 = vcmp.eq.s32.totalorder %v384, %v441
        %vm460 = vcmp.eq.s32.totalorder %v385, %v440
        %vm461 = vcmp.eq.s32.totalorder %v385, %v441
        %vm462 = vcmp.eq.s32.totalorder %v386, %v440
        %vm463 = vcmp.eq.s32.totalorder %v386, %v441
        %vm464 = vcmp.eq.s32.totalorder %v387, %v440
        %vm465 = vcmp.eq.s32.totalorder %v387, %v441
        %vm466 = vcmp.eq.s32.totalorder %v388, %v440
        %vm467 = vcmp.eq.s32.totalorder %v388, %v441
        %vm468 = vcmp.eq.s32.totalorder %v389, %v440
        %vm469 = vcmp.eq.s32.totalorder %v389, %v441
        %vm470 = vcmp.eq.s32.totalorder %v390, %v440
        %vm471 = vcmp.eq.s32.totalorder %v390, %v441
        %vm472 = vcmp.eq.s32.totalorder %v391, %v440
        %vm473 = vcmp.eq.s32.totalorder %v391, %v441
        %vm474 = vcmp.eq.s32.totalorder %v392, %v440
        %vm475 = vcmp.eq.s32.totalorder %v392, %v441
        %vm476 = vcmp.eq.s32.totalorder %v393, %v440
        %vm477 = vcmp.eq.s32.totalorder %v393, %v441
        %vm478 = vcmp.eq.s32.totalorder %v394, %v440
        %vm479 = vcmp.eq.s32.totalorder %v394, %v441
        %vm480 = vcmp.eq.s32.totalorder %v395, %v440
        %vm481 = vcmp.eq.s32.totalorder %v395, %v441
        %vm482 = vcmp.eq.s32.totalorder %v396, %v440
        %vm483 = vcmp.eq.s32.totalorder %v396, %v441
        %vm484 = vcmp.eq.s32.totalorder %v397, %v440
        %vm485 = vcmp.eq.s32.totalorder %v397, %v441
        %vm486 = vcmp.eq.s32.totalorder %v398, %v440
        %vm487 = vcmp.eq.s32.totalorder %v398, %v441
        %vm488 = vcmp.eq.s32.totalorder %v399, %v440
        %vm489 = vcmp.eq.s32.totalorder %v399, %v441
        %vm490 = vcmp.eq.s32.totalorder %v400, %v440
        %vm491 = vcmp.eq.s32.totalorder %v400, %v441
        %vm492 = vcmp.eq.s32.totalorder %v401, %v440
        %vm493 = vcmp.eq.s32.totalorder %v401, %v441
        %vm494 = vcmp.eq.s32.totalorder %v402, %v440
        %vm495 = vcmp.eq.s32.totalorder %v402, %v441
        %vm496 = vcmp.eq.s32.totalorder %v403, %v440
        %vm497 = vcmp.eq.s32.totalorder %v403, %v441
        %vm498 = vcmp.eq.s32.totalorder %v404, %v440
        %vm499 = vcmp.eq.s32.totalorder %v404, %v441
        %vm500 = vcmp.eq.s32.totalorder %v405, %v440
        %vm501 = vcmp.eq.s32.totalorder %v405, %v441
        %vm502 = vcmp.eq.s32.totalorder %v406, %v440
        %vm503 = vcmp.eq.s32.totalorder %v406, %v441
        %vm504 = vcmp.eq.s32.totalorder %v407, %v440
        %vm505 = vcmp.eq.s32.totalorder %v407, %v441
        %vm506 = vcmp.eq.s32.totalorder %v408, %v440
        %vm507 = vcmp.eq.s32.totalorder %v408, %v441
        %vm508 = vcmp.eq.s32.totalorder %v409, %v440
        %vm509 = vcmp.eq.s32.totalorder %v409, %v441
        %vm510 = vcmp.eq.s32.totalorder %v410, %v440
        %vm511 = vcmp.eq.s32.totalorder %v410, %v441
        %vm512 = vcmp.eq.s32.totalorder %v411, %v440
        %vm513 = vcmp.eq.s32.totalorder %v411, %v441
        %vm514 = vcmp.eq.s32.totalorder %v412, %v440
        %vm515 = vcmp.eq.s32.totalorder %v412, %v441
        %vm516 = vcmp.eq.s32.totalorder %v413, %v440
        %vm517 = vcmp.eq.s32.totalorder %v413, %v441
        %vm518 = vcmp.eq.s32.totalorder %v414, %v440
        %vm519 = vcmp.eq.s32.totalorder %v414, %v441
        %vm520 = vcmp.eq.s32.totalorder %v415, %v440
        %vm521 = vcmp.eq.s32.totalorder %v415, %v441
        %vm522 = vcmp.eq.s32.totalorder %v416, %v440
        %vm523 = vcmp.eq.s32.totalorder %v416, %v441
        %vm524 = vcmp.eq.s32.totalorder %v417, %v440
        %vm525 = vcmp.eq.s32.totalorder %v417, %v441
        %vm526 = vcmp.eq.s32.totalorder %v418, %v440
        %vm527 = vcmp.eq.s32.totalorder %v418, %v441
        %vm528 = vcmp.eq.s32.totalorder %v419, %v440
        %vm529 = vcmp.eq.s32.totalorder %v419, %v441
        %vm530 = vcmp.eq.s32.totalorder %v420, %v440
        %vm531 = vcmp.eq.s32.totalorder %v420, %v441
        %vm532 = vcmp.eq.s32.totalorder %v421, %v440
        %vm533 = vcmp.eq.s32.totalorder %v421, %v441
        %vm534 = vcmp.eq.s32.totalorder %v422, %v440
        %vm535 = vcmp.eq.s32.totalorder %v422, %v441
        %vm536 = vcmp.eq.s32.totalorder %v423, %v440
        %vm537 = vcmp.eq.s32.totalorder %v423, %v441
        %vm538 = vcmp.eq.s32.totalorder %v424, %v440
        %vm539 = vcmp.eq.s32.totalorder %v424, %v441
        %vm540 = vcmp.eq.s32.totalorder %v425, %v440
        %vm541 = vcmp.eq.s32.totalorder %v425, %v441
        %vm542 = vcmp.eq.s32.totalorder %v426, %v440
        %vm543 = vcmp.eq.s32.totalorder %v426, %v441
        %vm544 = vcmp.eq.s32.totalorder %v427, %v440
        %vm545 = vcmp.eq.s32.totalorder %v427, %v441
        %vm546 = vcmp.eq.s32.totalorder %v428, %v440
        %vm547 = vcmp.eq.s32.totalorder %v428, %v441
        %vm548 = vcmp.eq.s32.totalorder %v429, %v440
        %vm549 = vcmp.eq.s32.totalorder %v429, %v441
        %vm550 = vcmp.eq.s32.totalorder %v430, %v440
        %vm551 = vcmp.eq.s32.totalorder %v430, %v441
        %vm552 = vcmp.eq.s32.totalorder %v431, %v440
        %vm553 = vcmp.eq.s32.totalorder %v431, %v441
        %vm554 = vcmp.eq.s32.totalorder %v432, %v440
        %vm555 = vcmp.eq.s32.totalorder %v432, %v441
        %vm556 = vcmp.eq.s32.totalorder %v433, %v440
        %vm557 = vcmp.eq.s32.totalorder %v433, %v441
        %vm558 = vcmp.eq.s32.totalorder %v434, %v440
        %vm559 = vcmp.eq.s32.totalorder %v434, %v441
        %vm560 = vcmp.eq.s32.totalorder %v435, %v440
        %vm561 = vcmp.eq.s32.totalorder %v435, %v441
        %vm562 = vcmp.eq.s32.totalorder %v436, %v440
        %vm563 = vcmp.eq.s32.totalorder %v436, %v441
        %vm564 = vcmp.eq.s32.totalorder %v437, %v440
        %vm565 = vcmp.eq.s32.totalorder %v437, %v441
        %vm566 = vcmp.eq.s32.totalorder %v438, %v440
        %vm567 = vcmp.eq.s32.totalorder %v438, %v441
        %vm568 = vcmp.eq.s32.totalorder %v439, %v440
        %vm569 = vcmp.eq.s32.totalorder %v439, %v441
        %v570 = vadd.s32 %v374, 128
        %v571 = vperm.slane %v570, 0
        %v572 = vperm.slane %v570, 1
        %vm573 = vcmp.eq.s32.totalorder %v376, %v571
        %vm574 = vcmp.eq.s32.totalorder %v376, %v572
        %vm575 = vcmp.eq.s32.totalorder %v377, %v571
        %vm576 = vcmp.eq.s32.totalorder %v377, %v572
        %vm577 = vcmp.eq.s32.totalorder %v378, %v571
        %vm578 = vcmp.eq.s32.totalorder %v378, %v572
        %vm579 = vcmp.eq.s32.totalorder %v379, %v571
        %vm580 = vcmp.eq.s32.totalorder %v379, %v572
        %vm581 = vcmp.eq.s32.totalorder %v380, %v571
        %vm582 = vcmp.eq.s32.totalorder %v380, %v572
        %vm583 = vcmp.eq.s32.totalorder %v381, %v571
        %vm584 = vcmp.eq.s32.totalorder %v381, %v572
        %vm585 = vcmp.eq.s32.totalorder %v382, %v571
        %vm586 = vcmp.eq.s32.totalorder %v382, %v572
        %vm587 = vcmp.eq.s32.totalorder %v383, %v571
        %vm588 = vcmp.eq.s32.totalorder %v383, %v572
        %vm589 = vcmp.eq.s32.totalorder %v384, %v571
        %vm590 = vcmp.eq.s32.totalorder %v384, %v572
        %vm591 = vcmp.eq.s32.totalorder %v385, %v571
        %vm592 = vcmp.eq.s32.totalorder %v385, %v572
        %vm593 = vcmp.eq.s32.totalorder %v386, %v571
        %vm594 = vcmp.eq.s32.totalorder %v386, %v572
        %vm595 = vcmp.eq.s32.totalorder %v387, %v571
        %vm596 = vcmp.eq.s32.totalorder %v387, %v572
        %vm597 = vcmp.eq.s32.totalorder %v388, %v571
        %vm598 = vcmp.eq.s32.totalorder %v388, %v572
        %vm599 = vcmp.eq.s32.totalorder %v389, %v571
        %vm600 = vcmp.eq.s32.totalorder %v389, %v572
        %vm601 = vcmp.eq.s32.totalorder %v390, %v571
        %vm602 = vcmp.eq.s32.totalorder %v390, %v572
        %vm603 = vcmp.eq.s32.totalorder %v391, %v571
        %vm604 = vcmp.eq.s32.totalorder %v391, %v572
        %vm605 = vcmp.eq.s32.totalorder %v392, %v571
        %vm606 = vcmp.eq.s32.totalorder %v392, %v572
        %vm607 = vcmp.eq.s32.totalorder %v393, %v571
        %vm608 = vcmp.eq.s32.totalorder %v393, %v572
        %vm609 = vcmp.eq.s32.totalorder %v394, %v571
        %vm610 = vcmp.eq.s32.totalorder %v394, %v572
        %vm611 = vcmp.eq.s32.totalorder %v395, %v571
        %vm612 = vcmp.eq.s32.totalorder %v395, %v572
        %vm613 = vcmp.eq.s32.totalorder %v396, %v571
        %vm614 = vcmp.eq.s32.totalorder %v396, %v572
        %vm615 = vcmp.eq.s32.totalorder %v397, %v571
        %vm616 = vcmp.eq.s32.totalorder %v397, %v572
        %vm617 = vcmp.eq.s32.totalorder %v398, %v571
        %vm618 = vcmp.eq.s32.totalorder %v398, %v572
        %vm619 = vcmp.eq.s32.totalorder %v399, %v571
        %vm620 = vcmp.eq.s32.totalorder %v399, %v572
        %vm621 = vcmp.eq.s32.totalorder %v400, %v571
        %vm622 = vcmp.eq.s32.totalorder %v400, %v572
        %vm623 = vcmp.eq.s32.totalorder %v401, %v571
        %vm624 = vcmp.eq.s32.totalorder %v401, %v572
        %vm625 = vcmp.eq.s32.totalorder %v402, %v571
        %vm626 = vcmp.eq.s32.totalorder %v402, %v572
        %vm627 = vcmp.eq.s32.totalorder %v403, %v571
        %vm628 = vcmp.eq.s32.totalorder %v403, %v572
        %vm629 = vcmp.eq.s32.totalorder %v404, %v571
        %vm630 = vcmp.eq.s32.totalorder %v404, %v572
        %vm631 = vcmp.eq.s32.totalorder %v405, %v571
        %vm632 = vcmp.eq.s32.totalorder %v405, %v572
        %vm633 = vcmp.eq.s32.totalorder %v406, %v571
        %vm634 = vcmp.eq.s32.totalorder %v406, %v572
        %vm635 = vcmp.eq.s32.totalorder %v407, %v571
        %vm636 = vcmp.eq.s32.totalorder %v407, %v572
        %vm637 = vcmp.eq.s32.totalorder %v408, %v571
        %vm638 = vcmp.eq.s32.totalorder %v408, %v572
        %vm639 = vcmp.eq.s32.totalorder %v409, %v571
        %vm640 = vcmp.eq.s32.totalorder %v409, %v572
        %vm641 = vcmp.eq.s32.totalorder %v410, %v571
        %vm642 = vcmp.eq.s32.totalorder %v410, %v572
        %vm643 = vcmp.eq.s32.totalorder %v411, %v571
        %vm644 = vcmp.eq.s32.totalorder %v411, %v572
        %vm645 = vcmp.eq.s32.totalorder %v412, %v571
        %vm646 = vcmp.eq.s32.totalorder %v412, %v572
        %vm647 = vcmp.eq.s32.totalorder %v413, %v571
        %vm648 = vcmp.eq.s32.totalorder %v413, %v572
        %vm649 = vcmp.eq.s32.totalorder %v414, %v571
        %vm650 = vcmp.eq.s32.totalorder %v414, %v572
        %vm651 = vcmp.eq.s32.totalorder %v415, %v571
        %vm652 = vcmp.eq.s32.totalorder %v415, %v572
        %vm653 = vcmp.eq.s32.totalorder %v416, %v571
        %vm654 = vcmp.eq.s32.totalorder %v416, %v572
        %vm655 = vcmp.eq.s32.totalorder %v417, %v571
        %vm656 = vcmp.eq.s32.totalorder %v417, %v572
        %vm657 = vcmp.eq.s32.totalorder %v418, %v571
        %vm658 = vcmp.eq.s32.totalorder %v418, %v572
        %vm659 = vcmp.eq.s32.totalorder %v419, %v571
        %vm660 = vcmp.eq.s32.totalorder %v419, %v572
        %vm661 = vcmp.eq.s32.totalorder %v420, %v571
        %vm662 = vcmp.eq.s32.totalorder %v420, %v572
        %vm663 = vcmp.eq.s32.totalorder %v421, %v571
        %vm664 = vcmp.eq.s32.totalorder %v421, %v572
        %vm665 = vcmp.eq.s32.totalorder %v422, %v571
        %vm666 = vcmp.eq.s32.totalorder %v422, %v572
        %vm667 = vcmp.eq.s32.totalorder %v423, %v571
        %vm668 = vcmp.eq.s32.totalorder %v423, %v572
        %vm669 = vcmp.eq.s32.totalorder %v424, %v571
        %vm670 = vcmp.eq.s32.totalorder %v424, %v572
        %vm671 = vcmp.eq.s32.totalorder %v425, %v571
        %vm672 = vcmp.eq.s32.totalorder %v425, %v572
        %vm673 = vcmp.eq.s32.totalorder %v426, %v571
        %vm674 = vcmp.eq.s32.totalorder %v426, %v572
        %vm675 = vcmp.eq.s32.totalorder %v427, %v571
        %vm676 = vcmp.eq.s32.totalorder %v427, %v572
        %vm677 = vcmp.eq.s32.totalorder %v428, %v571
        %vm678 = vcmp.eq.s32.totalorder %v428, %v572
        %vm679 = vcmp.eq.s32.totalorder %v429, %v571
        %vm680 = vcmp.eq.s32.totalorder %v429, %v572
        %vm681 = vcmp.eq.s32.totalorder %v430, %v571
        %vm682 = vcmp.eq.s32.totalorder %v430, %v572
        %vm683 = vcmp.eq.s32.totalorder %v431, %v571
        %vm684 = vcmp.eq.s32.totalorder %v431, %v572
        %vm685 = vcmp.eq.s32.totalorder %v432, %v571
        %vm686 = vcmp.eq.s32.totalorder %v432, %v572
        %vm687 = vcmp.eq.s32.totalorder %v433, %v571
        %vm688 = vcmp.eq.s32.totalorder %v433, %v572
        %vm689 = vcmp.eq.s32.totalorder %v434, %v571
        %vm690 = vcmp.eq.s32.totalorder %v434, %v572
        %vm691 = vcmp.eq.s32.totalorder %v435, %v571
        %vm692 = vcmp.eq.s32.totalorder %v435, %v572
        %vm693 = vcmp.eq.s32.totalorder %v436, %v571
        %vm694 = vcmp.eq.s32.totalorder %v436, %v572
        %vm695 = vcmp.eq.s32.totalorder %v437, %v571
        %vm696 = vcmp.eq.s32.totalorder %v437, %v572
        %vm697 = vcmp.eq.s32.totalorder %v438, %v571
        %vm698 = vcmp.eq.s32.totalorder %v438, %v572
        %vm699 = vcmp.eq.s32.totalorder %v439, %v571
        %vm700 = vcmp.eq.s32.totalorder %v439, %v572
        %vm701 = vmor %vm442, %vm573
        %vm702 = vmor %vm443, %vm574
        %vm703 = vmor %vm444, %vm575
        %vm704 = vmor %vm445, %vm576
        %vm705 = vmor %vm446, %vm577
        %vm706 = vmor %vm447, %vm578
        %vm707 = vmor %vm448, %vm579
        %vm708 = vmor %vm449, %vm580
        %vm709 = vmor %vm450, %vm581
        %vm710 = vmor %vm451, %vm582
        %vm711 = vmor %vm452, %vm583
        %vm712 = vmor %vm453, %vm584
        %vm713 = vmor %vm454, %vm585
        %vm714 = vmor %vm455, %vm586
        %vm715 = vmor %vm456, %vm587
        %vm716 = vmor %vm457, %vm588
        %vm717 = vmor %vm458, %vm589
        %vm718 = vmor %vm459, %vm590
        %vm719 = vmor %vm460, %vm591
        %vm720 = vmor %vm461, %vm592
        %vm721 = vmor %vm462, %vm593
        %vm722 = vmor %vm463, %vm594
        %vm723 = vmor %vm464, %vm595
        %vm724 = vmor %vm465, %vm596
        %vm725 = vmor %vm466, %vm597
        %vm726 = vmor %vm467, %vm598
        %vm727 = vmor %vm468, %vm599
        %vm728 = vmor %vm469, %vm600
        %vm729 = vmor %vm470, %vm601
        %vm730 = vmor %vm471, %vm602
        %vm731 = vmor %vm472, %vm603
        %vm732 = vmor %vm473, %vm604
        %vm733 = vmor %vm474, %vm605
        %vm734 = vmor %vm475, %vm606
        %vm735 = vmor %vm476, %vm607
        %vm736 = vmor %vm477, %vm608
        %vm737 = vmor %vm478, %vm609
        %vm738 = vmor %vm479, %vm610
        %vm739 = vmor %vm480, %vm611
        %vm740 = vmor %vm481, %vm612
        %vm741 = vmor %vm482, %vm613
        %vm742 = vmor %vm483, %vm614
        %vm743 = vmor %vm484, %vm615
        %vm744 = vmor %vm485, %vm616
        %vm745 = vmor %vm486, %vm617
        %vm746 = vmor %vm487, %vm618
        %vm747 = vmor %vm488, %vm619
        %vm748 = vmor %vm489, %vm620
        %vm749 = vmor %vm490, %vm621
        %vm750 = vmor %vm491, %vm622
        %vm751 = vmor %vm492, %vm623
        %vm752 = vmor %vm493, %vm624
        %vm753 = vmor %vm494, %vm625
        %vm754 = vmor %vm495, %vm626
        %vm755 = vmor %vm496, %vm627
        %vm756 = vmor %vm497, %vm628
        %vm757 = vmor %vm498, %vm629
        %vm758 = vmor %vm499, %vm630
        %vm759 = vmor %vm500, %vm631
        %vm760 = vmor %vm501, %vm632
        %vm761 = vmor %vm502, %vm633
        %vm762 = vmor %vm503, %vm634
        %vm763 = vmor %vm504, %vm635
        %vm764 = vmor %vm505, %vm636
        %vm765 = vmor %vm506, %vm637
        %vm766 = vmor %vm507, %vm638
        %vm767 = vmor %vm508, %vm639
        %vm768 = vmor %vm509, %vm640
        %vm769 = vmor %vm510, %vm641
        %vm770 = vmor %vm511, %vm642
        %vm771 = vmor %vm512, %vm643
        %vm772 = vmor %vm513, %vm644
        %vm773 = vmor %vm514, %vm645
        %vm774 = vmor %vm515, %vm646
        %vm775 = vmor %vm516, %vm647
        %vm776 = vmor %vm517, %vm648
        %vm777 = vmor %vm518, %vm649
        %vm778 = vmor %vm519, %vm650
        %vm779 = vmor %vm520, %vm651
        %vm780 = vmor %vm521, %vm652
        %vm781 = vmor %vm522, %vm653
        %vm782 = vmor %vm523, %vm654
        %vm783 = vmor %vm524, %vm655
        %vm784 = vmor %vm525, %vm656
        %vm785 = vmor %vm526, %vm657
        %vm786 = vmor %vm527, %vm658
        %vm787 = vmor %vm528, %vm659
        %vm788 = vmor %vm529, %vm660
        %vm789 = vmor %vm530, %vm661
        %vm790 = vmor %vm531, %vm662
        %vm791 = vmor %vm532, %vm663
        %vm792 = vmor %vm533, %vm664
        %vm793 = vmor %vm534, %vm665
        %vm794 = vmor %vm535, %vm666
        %vm795 = vmor %vm536, %vm667
        %vm796 = vmor %vm537, %vm668
        %vm797 = vmor %vm538, %vm669
        %vm798 = vmor %vm539, %vm670
        %vm799 = vmor %vm540, %vm671
        %vm800 = vmor %vm541, %vm672
        %vm801 = vmor %vm542, %vm673
        %vm802 = vmor %vm543, %vm674
        %vm803 = vmor %vm544, %vm675
        %vm804 = vmor %vm545, %vm676
        %vm805 = vmor %vm546, %vm677
        %vm806 = vmor %vm547, %vm678
        %vm807 = vmor %vm548, %vm679
        %vm808 = vmor %vm549, %vm680
        %vm809 = vmor %vm550, %vm681
        %vm810 = vmor %vm551, %vm682
        %vm811 = vmor %vm552, %vm683
        %vm812 = vmor %vm553, %vm684
        %vm813 = vmor %vm554, %vm685
        %vm814 = vmor %vm555, %vm686
        %vm815 = vmor %vm556, %vm687
        %vm816 = vmor %vm557, %vm688
        %vm817 = vmor %vm558, %vm689
        %vm818 = vmor %vm559, %vm690
        %vm819 = vmor %vm560, %vm691
        %vm820 = vmor %vm561, %vm692
        %vm821 = vmor %vm562, %vm693
        %vm822 = vmor %vm563, %vm694
        %vm823 = vmor %vm564, %vm695
        %vm824 = vmor %vm565, %vm696
        %vm825 = vmor %vm566, %vm697
        %vm826 = vmor %vm567, %vm698
        %vm827 = vmor %vm568, %vm699
        %vm828 = vmor %vm569, %vm700
        %v829 = vsel %vm701, 1, 0
        %v830 = vsel %vm702, 1, 0
        %v831 = vsel %vm703, 1, 0
        %v832 = vsel %vm704, 1, 0
        %v833 = vsel %vm705, 1, 0
        %v834 = vsel %vm706, 1, 0
        %v835 = vsel %vm707, 1, 0
        %v836 = vsel %vm708, 1, 0
        %v837 = vsel %vm709, 1, 0
        %v838 = vsel %vm710, 1, 0
        %v839 = vsel %vm711, 1, 0
        %v840 = vsel %vm712, 1, 0
        %v841 = vsel %vm713, 1, 0
        %v842 = vsel %vm714, 1, 0
        %v843 = vsel %vm715, 1, 0
        %v844 = vsel %vm716, 1, 0
        %v845 = vsel %vm717, 1, 0
        %v846 = vsel %vm718, 1, 0
        %v847 = vsel %vm719, 1, 0
        %v848 = vsel %vm720, 1, 0
        %v849 = vsel %vm721, 1, 0
        %v850 = vsel %vm722, 1, 0
        %v851 = vsel %vm723, 1, 0
        %v852 = vsel %vm724, 1, 0
        %v853 = vsel %vm725, 1, 0
        %v854 = vsel %vm726, 1, 0
        %v855 = vsel %vm727, 1, 0
        %v856 = vsel %vm728, 1, 0
        %v857 = vsel %vm729, 1, 0
        %v858 = vsel %vm730, 1, 0
        %v859 = vsel %vm731, 1, 0
        %v860 = vsel %vm732, 1, 0
        %v861 = vsel %vm733, 1, 0
        %v862 = vsel %vm734, 1, 0
        %v863 = vsel %vm735, 1, 0
        %v864 = vsel %vm736, 1, 0
        %v865 = vsel %vm737, 1, 0
        %v866 = vsel %vm738, 1, 0
        %v867 = vsel %vm739, 1, 0
        %v868 = vsel %vm740, 1, 0
        %v869 = vsel %vm741, 1, 0
        %v870 = vsel %vm742, 1, 0
        %v871 = vsel %vm743, 1, 0
        %v872 = vsel %vm744, 1, 0
        %v873 = vsel %vm745, 1, 0
        %v874 = vsel %vm746, 1, 0
        %v875 = vsel %vm747, 1, 0
        %v876 = vsel %vm748, 1, 0
        %v877 = vsel %vm749, 1, 0
        %v878 = vsel %vm750, 1, 0
        %v879 = vsel %vm751, 1, 0
        %v880 = vsel %vm752, 1, 0
        %v881 = vsel %vm753, 1, 0
        %v882 = vsel %vm754, 1, 0
        %v883 = vsel %vm755, 1, 0
        %v884 = vsel %vm756, 1, 0
        %v885 = vsel %vm757, 1, 0
        %v886 = vsel %vm758, 1, 0
        %v887 = vsel %vm759, 1, 0
        %v888 = vsel %vm760, 1, 0
        %v889 = vsel %vm761, 1, 0
        %v890 = vsel %vm762, 1, 0
        %v891 = vsel %vm763, 1, 0
        %v892 = vsel %vm764, 1, 0
        %v893 = vsel %vm765, 1, 0
        %v894 = vsel %vm766, 1, 0
        %v895 = vsel %vm767, 1, 0
        %v896 = vsel %vm768, 1, 0
        %v897 = vsel %vm769, 1, 0
        %v898 = vsel %vm770, 1, 0
        %v899 = vsel %vm771, 1, 0
        %v900 = vsel %vm772, 1, 0
        %v901 = vsel %vm773, 1, 0
        %v902 = vsel %vm774, 1, 0
        %v903 = vsel %vm775, 1, 0
        %v904 = vsel %vm776, 1, 0
        %v905 = vsel %vm777, 1, 0
        %v906 = vsel %vm778, 1, 0
        %v907 = vsel %vm779, 1, 0
        %v908 = vsel %vm780, 1, 0
        %v909 = vsel %vm781, 1, 0
        %v910 = vsel %vm782, 1, 0
        %v911 = vsel %vm783, 1, 0
        %v912 = vsel %vm784, 1, 0
        %v913 = vsel %vm785, 1, 0
        %v914 = vsel %vm786, 1, 0
        %v915 = vsel %vm787, 1, 0
        %v916 = vsel %vm788, 1, 0
        %v917 = vsel %vm789, 1, 0
        %v918 = vsel %vm790, 1, 0
        %v919 = vsel %vm791, 1, 0
        %v920 = vsel %vm792, 1, 0
        %v921 = vsel %vm793, 1, 0
        %v922 = vsel %vm794, 1, 0
        %v923 = vsel %vm795, 1, 0
        %v924 = vsel %vm796, 1, 0
        %v925 = vsel %vm797, 1, 0
        %v926 = vsel %vm798, 1, 0
        %v927 = vsel %vm799, 1, 0
        %v928 = vsel %vm800, 1, 0
        %v929 = vsel %vm801, 1, 0
        %v930 = vsel %vm802, 1, 0
        %v931 = vsel %vm803, 1, 0
        %v932 = vsel %vm804, 1, 0
        %v933 = vsel %vm805, 1, 0
        %v934 = vsel %vm806, 1, 0
        %v935 = vsel %vm807, 1, 0
        %v936 = vsel %vm808, 1, 0
        %v937 = vsel %vm809, 1, 0
        %v938 = vsel %vm810, 1, 0
        %v939 = vsel %vm811, 1, 0
        %v940 = vsel %vm812, 1, 0
        %v941 = vsel %vm813, 1, 0
        %v942 = vsel %vm814, 1, 0
        %v943 = vsel %vm815, 1, 0
        %v944 = vsel %vm816, 1, 0
        %v945 = vsel %vm817, 1, 0
        %v946 = vsel %vm818, 1, 0
        %v947 = vsel %vm819, 1, 0
        %v948 = vsel %vm820, 1, 0
        %v949 = vsel %vm821, 1, 0
        %v950 = vsel %vm822, 1, 0
        %v951 = vsel %vm823, 1, 0
        %v952 = vsel %vm824, 1, 0
        %v953 = vsel %vm825, 1, 0
        %v954 = vsel %vm826, 1, 0
        %v955 = vsel %vm827, 1, 0
        %v956 = vsel %vm828, 1, 0
        %v957 = vcvt.s32.f32 %v829
        %v958 = vcvt.s32.f32 %v830
        %v959 = vcvt.s32.f32 %v831
        %v960 = vcvt.s32.f32 %v832
        %v961 = vcvt.s32.f32 %v833
        %v962 = vcvt.s32.f32 %v834
        %v963 = vcvt.s32.f32 %v835
        %v964 = vcvt.s32.f32 %v836
        %v965 = vcvt.s32.f32 %v837
        %v966 = vcvt.s32.f32 %v838
        %v967 = vcvt.s32.f32 %v839
        %v968 = vcvt.s32.f32 %v840
        %v969 = vcvt.s32.f32 %v841
        %v970 = vcvt.s32.f32 %v842
        %v971 = vcvt.s32.f32 %v843
        %v972 = vcvt.s32.f32 %v844
        %v973 = vcvt.s32.f32 %v845
        %v974 = vcvt.s32.f32 %v846
        %v975 = vcvt.s32.f32 %v847
        %v976 = vcvt.s32.f32 %v848
        %v977 = vcvt.s32.f32 %v849
        %v978 = vcvt.s32.f32 %v850
        %v979 = vcvt.s32.f32 %v851
        %v980 = vcvt.s32.f32 %v852
        %v981 = vcvt.s32.f32 %v853
        %v982 = vcvt.s32.f32 %v854
        %v983 = vcvt.s32.f32 %v855
        %v984 = vcvt.s32.f32 %v856
        %v985 = vcvt.s32.f32 %v857
        %v986 = vcvt.s32.f32 %v858
        %v987 = vcvt.s32.f32 %v859
        %v988 = vcvt.s32.f32 %v860
        %v989 = vcvt.s32.f32 %v861
        %v990 = vcvt.s32.f32 %v862
        %v991 = vcvt.s32.f32 %v863
        %v992 = vcvt.s32.f32 %v864
        %v993 = vcvt.s32.f32 %v865
        %v994 = vcvt.s32.f32 %v866
        %v995 = vcvt.s32.f32 %v867
        %v996 = vcvt.s32.f32 %v868
        %v997 = vcvt.s32.f32 %v869
        %v998 = vcvt.s32.f32 %v870
        %v999 = vcvt.s32.f32 %v871
        %v1000 = vcvt.s32.f32 %v872
        %v1001 = vcvt.s32.f32 %v873
        %v1002 = vcvt.s32.f32 %v874
        %v1003 = vcvt.s32.f32 %v875
        %v1004 = vcvt.s32.f32 %v876
        %v1005 = vcvt.s32.f32 %v877
        %v1006 = vcvt.s32.f32 %v878
        %v1007 = vcvt.s32.f32 %v879
        %v1008 = vcvt.s32.f32 %v880
        %v1009 = vcvt.s32.f32 %v881
        %v1010 = vcvt.s32.f32 %v882
        %v1011 = vcvt.s32.f32 %v883
        %v1012 = vcvt.s32.f32 %v884
        %v1013 = vcvt.s32.f32 %v885
        %v1014 = vcvt.s32.f32 %v886
        %v1015 = vcvt.s32.f32 %v887
        %v1016 = vcvt.s32.f32 %v888
        %v1017 = vcvt.s32.f32 %v889
        %v1018 = vcvt.s32.f32 %v890
        %v1019 = vcvt.s32.f32 %v891
        %v1020 = vcvt.s32.f32 %v892
        %v1021 = vcvt.s32.f32 %v893
        %v1022 = vcvt.s32.f32 %v894
        %v1023 = vcvt.s32.f32 %v895
        %v1024 = vcvt.s32.f32 %v896
        %v1025 = vcvt.s32.f32 %v897
        %v1026 = vcvt.s32.f32 %v898
        %v1027 = vcvt.s32.f32 %v899
        %v1028 = vcvt.s32.f32 %v900
        %v1029 = vcvt.s32.f32 %v901
        %v1030 = vcvt.s32.f32 %v902
        %v1031 = vcvt.s32.f32 %v903
        %v1032 = vcvt.s32.f32 %v904
        %v1033 = vcvt.s32.f32 %v905
        %v1034 = vcvt.s32.f32 %v906
        %v1035 = vcvt.s32.f32 %v907
        %v1036 = vcvt.s32.f32 %v908
        %v1037 = vcvt.s32.f32 %v909
        %v1038 = vcvt.s32.f32 %v910
        %v1039 = vcvt.s32.f32 %v911
        %v1040 = vcvt.s32.f32 %v912
        %v1041 = vcvt.s32.f32 %v913
        %v1042 = vcvt.s32.f32 %v914
        %v1043 = vcvt.s32.f32 %v915
        %v1044 = vcvt.s32.f32 %v916
        %v1045 = vcvt.s32.f32 %v917
        %v1046 = vcvt.s32.f32 %v918
        %v1047 = vcvt.s32.f32 %v919
        %v1048 = vcvt.s32.f32 %v920
        %v1049 = vcvt.s32.f32 %v921
        %v1050 = vcvt.s32.f32 %v922
        %v1051 = vcvt.s32.f32 %v923
        %v1052 = vcvt.s32.f32 %v924
        %v1053 = vcvt.s32.f32 %v925
        %v1054 = vcvt.s32.f32 %v926
        %v1055 = vcvt.s32.f32 %v927
        %v1056 = vcvt.s32.f32 %v928
        %v1057 = vcvt.s32.f32 %v929
        %v1058 = vcvt.s32.f32 %v930
        %v1059 = vcvt.s32.f32 %v931
        %v1060 = vcvt.s32.f32 %v932
        %v1061 = vcvt.s32.f32 %v933
        %v1062 = vcvt.s32.f32 %v934
        %v1063 = vcvt.s32.f32 %v935
        %v1064 = vcvt.s32.f32 %v936
        %v1065 = vcvt.s32.f32 %v937
        %v1066 = vcvt.s32.f32 %v938
        %v1067 = vcvt.s32.f32 %v939
        %v1068 = vcvt.s32.f32 %v940
        %v1069 = vcvt.s32.f32 %v941
        %v1070 = vcvt.s32.f32 %v942
        %v1071 = vcvt.s32.f32 %v943
        %v1072 = vcvt.s32.f32 %v944
        %v1073 = vcvt.s32.f32 %v945
        %v1074 = vcvt.s32.f32 %v946
        %v1075 = vcvt.s32.f32 %v947
        %v1076 = vcvt.s32.f32 %v948
        %v1077 = vcvt.s32.f32 %v949
        %v1078 = vcvt.s32.f32 %v950
        %v1079 = vcvt.s32.f32 %v951
        %v1080 = vcvt.s32.f32 %v952
        %v1081 = vcvt.s32.f32 %v953
        %v1082 = vcvt.s32.f32 %v954
        %v1083 = vcvt.s32.f32 %v955
        %v1084 = vcvt.s32.f32 %v956
        %v1085 = vld [vmem:[%s267] sm:$0xff]
        %v1086 = vld [vmem:[%s267 + $0x8] sm:$0xff]
        %v1087 = vld [vmem:[%s267 + $0x10] sm:$0xff]
        %v1088 = vld [vmem:[%s267 + $0x18] sm:$0xff]
        %v1089 = vld [vmem:[%s267 + $0x20] sm:$0xff]
        %v1090 = vld [vmem:[%s267 + $0x28] sm:$0xff]
        %v1091 = vld [vmem:[%s267 + $0x30] sm:$0xff]
        %v1092 = vld [vmem:[%s267 + $0x38] sm:$0xff]
        %v1093 = vld [vmem:[%s267 + $0x40] sm:$0xff]
        %v1094 = vld [vmem:[%s267 + $0x48] sm:$0xff]
        %v1095 = vld [vmem:[%s267 + $0x50] sm:$0xff]
        %v1096 = vld [vmem:[%s267 + $0x58] sm:$0xff]
        %v1097 = vld [vmem:[%s267 + $0x60] sm:$0xff]
        %v1098 = vld [vmem:[%s267 + $0x68] sm:$0xff]
        %v1099 = vld [vmem:[%s267 + $0x70] sm:$0xff]
        %v1100 = vld [vmem:[%s267 + $0x78] sm:$0xff]
        %1101 = vmatpush.msra.mxu0 %v987
        %1102 = vmatpush.msra.mxu0 %v985
        %1103 = vmatpush.msra.mxu0 %v983
        %1104 = vmatpush.msra.mxu0 %v981
        %1105 = vmatpush.msra.mxu0 %v979
        %1106 = vmatpush.msra.mxu0 %v977
        %1107 = vmatpush.msra.mxu0 %v975
        %1108 = vmatpush.msra.mxu0 %v973
        %1109 = vmatpush.msra.mxu0 %v971
        %1110 = vmatpush.msra.mxu0 %v969
        %1111 = vmatpush.msra.mxu0 %v967
        %1112 = vmatpush.msra.mxu0 %v965
        %1113 = vmatpush.msra.mxu0 %v963
        %1114 = vmatpush.msra.mxu0 %v961
        %1115 = vmatpush.msra.mxu0 %v959
        %1116 = vmatpush.msra.mxu0 %v957
        %1117 = vmatmul.f32.gmra.mxu0 %v1085
        %v1118 = vpop.f32.mrf.mxu0
        %v1119 = vadd.f32 0.0, %v1118
        %1120 = vmatmul.f32.gmra.mxu0 %v1089
        %v1121 = vpop.f32.mrf.mxu0
        %v1122 = vadd.f32 0.0, %v1121
        %1123 = vmatmul.f32.gmra.mxu0 %v1093
        %v1124 = vpop.f32.mrf.mxu0
        %v1125 = vadd.f32 0.0, %v1124
        %1126 = vmatmul.f32.gmra.mxu0 %v1097
        %v1127 = vpop.f32.mrf.mxu0
        %v1128 = vadd.f32 0.0, %v1127
        %1129 = vdwg.mxu0
        %1130 = vmatpush.msra.mxu0 %v1019
        %1131 = vmatpush.msra.mxu0 %v1017
        %1132 = vmatpush.msra.mxu0 %v1015
        %1133 = vmatpush.msra.mxu0 %v1013
        %1134 = vmatpush.msra.mxu0 %v1011
        %1135 = vmatpush.msra.mxu0 %v1009
        %1136 = vmatpush.msra.mxu0 %v1007
        %1137 = vmatpush.msra.mxu0 %v1005
        %1138 = vmatpush.msra.mxu0 %v1003
        %1139 = vmatpush.msra.mxu0 %v1001
        %1140 = vmatpush.msra.mxu0 %v999
        %1141 = vmatpush.msra.mxu0 %v997
        %1142 = vmatpush.msra.mxu0 %v995
        %1143 = vmatpush.msra.mxu0 %v993
        %1144 = vmatpush.msra.mxu0 %v991
        %1145 = vmatpush.msra.mxu0 %v989
        %1146 = vmatmul.f32.gmra.mxu0 %v1086
        %v1147 = vpop.f32.mrf.mxu0
        %v1148 = vadd.f32 %v1119, %v1147
        %1149 = vmatmul.f32.gmra.mxu0 %v1090
        %v1150 = vpop.f32.mrf.mxu0
        %v1151 = vadd.f32 %v1122, %v1150
        %1152 = vmatmul.f32.gmra.mxu0 %v1094
        %v1153 = vpop.f32.mrf.mxu0
        %v1154 = vadd.f32 %v1125, %v1153
        %1155 = vmatmul.f32.gmra.mxu0 %v1098
        %v1156 = vpop.f32.mrf.mxu0
        %v1157 = vadd.f32 %v1128, %v1156
        %1158 = vdwg.mxu0
        %1159 = vmatpush.msra.mxu0 %v1051
        %1160 = vmatpush.msra.mxu0 %v1049
        %1161 = vmatpush.msra.mxu0 %v1047
        %1162 = vmatpush.msra.mxu0 %v1045
        %1163 = vmatpush.msra.mxu0 %v1043
        %1164 = vmatpush.msra.mxu0 %v1041
        %1165 = vmatpush.msra.mxu0 %v1039
        %1166 = vmatpush.msra.mxu0 %v1037
        %1167 = vmatpush.msra.mxu0 %v1035
        %1168 = vmatpush.msra.mxu0 %v1033
        %1169 = vmatpush.msra.mxu0 %v1031
        %1170 = vmatpush.msra.mxu0 %v1029
        %1171 = vmatpush.msra.mxu0 %v1027
        %1172 = vmatpush.msra.mxu0 %v1025
        %1173 = vmatpush.msra.mxu0 %v1023
        %1174 = vmatpush.msra.mxu0 %v1021
        %1175 = vmatmul.f32.gmra.mxu0 %v1087
        %v1176 = vpop.f32.mrf.mxu0
        %v1177 = vadd.f32 %v1148, %v1176
        %1178 = vmatmul.f32.gmra.mxu0 %v1091
        %v1179 = vpop.f32.mrf.mxu0
        %v1180 = vadd.f32 %v1151, %v1179
        %1181 = vmatmul.f32.gmra.mxu0 %v1095
        %v1182 = vpop.f32.mrf.mxu0
        %v1183 = vadd.f32 %v1154, %v1182
        %1184 = vmatmul.f32.gmra.mxu0 %v1099
        %v1185 = vpop.f32.mrf.mxu0
        %v1186 = vadd.f32 %v1157, %v1185
        %1187 = vdwg.mxu0
        %1188 = vmatpush.msra.mxu0 %v1083
        %1189 = vmatpush.msra.mxu0 %v1081
        %1190 = vmatpush.msra.mxu0 %v1079
        %1191 = vmatpush.msra.mxu0 %v1077
        %1192 = vmatpush.msra.mxu0 %v1075
        %1193 = vmatpush.msra.mxu0 %v1073
        %1194 = vmatpush.msra.mxu0 %v1071
        %1195 = vmatpush.msra.mxu0 %v1069
        %1196 = vmatpush.msra.mxu0 %v1067
        %1197 = vmatpush.msra.mxu0 %v1065
        %1198 = vmatpush.msra.mxu0 %v1063
        %1199 = vmatpush.msra.mxu0 %v1061
        %1200 = vmatpush.msra.mxu0 %v1059
        %1201 = vmatpush.msra.mxu0 %v1057
        %1202 = vmatpush.msra.mxu0 %v1055
        %1203 = vmatpush.msra.mxu0 %v1053
        %1204 = vmatmul.f32.gmra.mxu0 %v1088
        %v1205 = vpop.f32.mrf.mxu0
        %v1206 = vadd.f32 %v1177, %v1205
        %1207 = vmatmul.f32.gmra.mxu0 %v1092
        %v1208 = vpop.f32.mrf.mxu0
        %v1209 = vadd.f32 %v1180, %v1208
        %1210 = vmatmul.f32.gmra.mxu0 %v1096
        %v1211 = vpop.f32.mrf.mxu0
        %v1212 = vadd.f32 %v1183, %v1211
        %1213 = vmatmul.f32.gmra.mxu0 %v1100
        %v1214 = vpop.f32.mrf.mxu0
        %v1215 = vadd.f32 %v1186, %v1214
        %1216 = vdwg.mxu0
        %1217 = vmatpush.msra.mxu0 %v988
        %1218 = vmatpush.msra.mxu0 %v986
        %1219 = vmatpush.msra.mxu0 %v984
        %1220 = vmatpush.msra.mxu0 %v982
        %1221 = vmatpush.msra.mxu0 %v980
        %1222 = vmatpush.msra.mxu0 %v978
        %1223 = vmatpush.msra.mxu0 %v976
        %1224 = vmatpush.msra.mxu0 %v974
        %1225 = vmatpush.msra.mxu0 %v972
        %1226 = vmatpush.msra.mxu0 %v970
        %1227 = vmatpush.msra.mxu0 %v968
        %1228 = vmatpush.msra.mxu0 %v966
        %1229 = vmatpush.msra.mxu0 %v964
        %1230 = vmatpush.msra.mxu0 %v962
        %1231 = vmatpush.msra.mxu0 %v960
        %1232 = vmatpush.msra.mxu0 %v958
        %1233 = vmatmul.f32.gmra.mxu0 %v1085
        %v1234 = vpop.f32.mrf.mxu0
        %v1235 = vadd.f32 0.0, %v1234
        %1236 = vmatmul.f32.gmra.mxu0 %v1089
        %v1237 = vpop.f32.mrf.mxu0
        %v1238 = vadd.f32 0.0, %v1237
        %1239 = vmatmul.f32.gmra.mxu0 %v1093
        %v1240 = vpop.f32.mrf.mxu0
        %v1241 = vadd.f32 0.0, %v1240
        %1242 = vmatmul.f32.gmra.mxu0 %v1097
        %v1243 = vpop.f32.mrf.mxu0
        %v1244 = vadd.f32 0.0, %v1243
        %1245 = vdwg.mxu0
        %1246 = vmatpush.msra.mxu0 %v1020
        %1247 = vmatpush.msra.mxu0 %v1018
        %1248 = vmatpush.msra.mxu0 %v1016
        %1249 = vmatpush.msra.mxu0 %v1014
        %1250 = vmatpush.msra.mxu0 %v1012
        %1251 = vmatpush.msra.mxu0 %v1010
        %1252 = vmatpush.msra.mxu0 %v1008
        %1253 = vmatpush.msra.mxu0 %v1006
        %1254 = vmatpush.msra.mxu0 %v1004
        %1255 = vmatpush.msra.mxu0 %v1002
        %1256 = vmatpush.msra.mxu0 %v1000
        %1257 = vmatpush.msra.mxu0 %v998
        %1258 = vmatpush.msra.mxu0 %v996
        %1259 = vmatpush.msra.mxu0 %v994
        %1260 = vmatpush.msra.mxu0 %v992
        %1261 = vmatpush.msra.mxu0 %v990
        %1262 = vmatmul.f32.gmra.mxu0 %v1086
        %v1263 = vpop.f32.mrf.mxu0
        %v1264 = vadd.f32 %v1235, %v1263
        %1265 = vmatmul.f32.gmra.mxu0 %v1090
        %v1266 = vpop.f32.mrf.mxu0
        %v1267 = vadd.f32 %v1238, %v1266
        %1268 = vmatmul.f32.gmra.mxu0 %v1094
        %v1269 = vpop.f32.mrf.mxu0
        %v1270 = vadd.f32 %v1241, %v1269
        %1271 = vmatmul.f32.gmra.mxu0 %v1098
        %v1272 = vpop.f32.mrf.mxu0
        %v1273 = vadd.f32 %v1244, %v1272
        %1274 = vdwg.mxu0
        %1275 = vmatpush.msra.mxu0 %v1052
        %1276 = vmatpush.msra.mxu0 %v1050
        %1277 = vmatpush.msra.mxu0 %v1048
        %1278 = vmatpush.msra.mxu0 %v1046
        %1279 = vmatpush.msra.mxu0 %v1044
        %1280 = vmatpush.msra.mxu0 %v1042
        %1281 = vmatpush.msra.mxu0 %v1040
        %1282 = vmatpush.msra.mxu0 %v1038
        %1283 = vmatpush.msra.mxu0 %v1036
        %1284 = vmatpush.msra.mxu0 %v1034
        %1285 = vmatpush.msra.mxu0 %v1032
        %1286 = vmatpush.msra.mxu0 %v1030
        %1287 = vmatpush.msra.mxu0 %v1028
        %1288 = vmatpush.msra.mxu0 %v1026
        %1289 = vmatpush.msra.mxu0 %v1024
        %1290 = vmatpush.msra.mxu0 %v1022
        %1291 = vmatmul.f32.gmra.mxu0 %v1087
        %v1292 = vpop.f32.mrf.mxu0
        %v1293 = vadd.f32 %v1264, %v1292
        %1294 = vmatmul.f32.gmra.mxu0 %v1091
        %v1295 = vpop.f32.mrf.mxu0
        %v1296 = vadd.f32 %v1267, %v1295
        %1297 = vmatmul.f32.gmra.mxu0 %v1095
        %v1298 = vpop.f32.mrf.mxu0
        %v1299 = vadd.f32 %v1270, %v1298
        %1300 = vmatmul.f32.gmra.mxu0 %v1099
        %v1301 = vpop.f32.mrf.mxu0
        %v1302 = vadd.f32 %v1273, %v1301
        %1303 = vdwg.mxu0
        %1304 = vmatpush.msra.mxu0 %v1084
        %1305 = vmatpush.msra.mxu0 %v1082
        %1306 = vmatpush.msra.mxu0 %v1080
        %1307 = vmatpush.msra.mxu0 %v1078
        %1308 = vmatpush.msra.mxu0 %v1076
        %1309 = vmatpush.msra.mxu0 %v1074
        %1310 = vmatpush.msra.mxu0 %v1072
        %1311 = vmatpush.msra.mxu0 %v1070
        %1312 = vmatpush.msra.mxu0 %v1068
        %1313 = vmatpush.msra.mxu0 %v1066
        %1314 = vmatpush.msra.mxu0 %v1064
        %1315 = vmatpush.msra.mxu0 %v1062
        %1316 = vmatpush.msra.mxu0 %v1060
        %1317 = vmatpush.msra.mxu0 %v1058
        %1318 = vmatpush.msra.mxu0 %v1056
        %1319 = vmatpush.msra.mxu0 %v1054
        %1320 = vmatmul.f32.gmra.mxu0 %v1088
        %v1321 = vpop.f32.mrf.mxu0
        %v1322 = vadd.f32 %v1293, %v1321
        %1323 = vmatmul.f32.gmra.mxu0 %v1092
        %v1324 = vpop.f32.mrf.mxu0
        %v1325 = vadd.f32 %v1296, %v1324
        %1326 = vmatmul.f32.gmra.mxu0 %v1096
        %v1327 = vpop.f32.mrf.mxu0
        %v1328 = vadd.f32 %v1299, %v1327
        %1329 = vmatmul.f32.gmra.mxu0 %v1100
        %v1330 = vpop.f32.mrf.mxu0
        %v1331 = vadd.f32 %v1302, %v1330
        %1332 = vdwg.mxu0
        %v1333 = vsel %vm334, 0.0, 1.0
        %v1335 = vperm.slane %v1333, 0
        %v1336 = vperm.slane %v1333, 1
        %v1339 = vmul.f32 %v1206, %v1335
        %v1340 = vmul.f32 %v1322, %v1336
        %v1341 = vmul.f32 %v1209, %v1335
        %v1342 = vmul.f32 %v1325, %v1336
        %v1343 = vmul.f32 %v1212, %v1335
        %v1344 = vmul.f32 %v1328, %v1336
        %v1345 = vmul.f32 %v1215, %v1335
        %v1346 = vmul.f32 %v1331, %v1336
        %1347 = vst [vmem:[%s320] sm:$0xff] %v1339
        %1348 = vst [vmem:[%s320 + $0x8] sm:$0xff] %v1340
        %1349 = vst [vmem:[%s320 + $0x10] sm:$0xff] %v1341
        %1350 = vst [vmem:[%s320 + $0x18] sm:$0xff] %v1342
        %1351 = vst [vmem:[%s320 + $0x20] sm:$0xff] %v1343
        %1352 = vst [vmem:[%s320 + $0x28] sm:$0xff] %v1344
        %1353 = vst [vmem:[%s320 + $0x30] sm:$0xff] %v1345
        %1354 = vst [vmem:[%s320 + $0x38] sm:$0xff] %v1346
        %s1355 = sand.u32 %s132, 1
        %s1356 = scalar_lea.sflag [#allocation4], %s1355
        %s1357 = sand.u32 %s132, 1
        %s1358 = smul.addr %s1357, 64
        %s1359 = scalar_lea.vmem [#allocation8], %s1358
        %s1360 = sand.u32 %s160, 1
        %s1361 = scalar_lea.sflag [#allocation10], %s1360
        %s1362 = sand.u32 %s160, 1
        %s1363 = smul.addr %s1362, 2
        %s1364 = scalar_lea.vmem [#allocation9], %s1363
        // Predicated region
        $region45: #{tpu_custom_call.1} parent=31 // pred_check
          %p1365 = pneg %p142
        $region46: #{tpu_custom_call.1} parent=31 // pred_check_branch
          %1367 = sbr.rel (%p1365) target = $region48
        $region47: #{tpu_custom_call.1} parent=31 // pred_region
          %s1368 = smul.u32 2, %s33
          %1370 = vsyncadd %s1356, 0
          %s1371 = smul.addr %s32, 8
          %s1372 = sadd.s32 %s1368, %s1371
          %s1373 = smul.addr %s1372, 8
          %s1374 = scalar_lea.hbm %s3, %s1373
          %s1375 = sshll.u32 %s1359, 4
          %s1376 = int_to_ptr.vmem [resolvable:$true] %s1375
          %s1377 = sshll.u32 %s1374, 4
          %s1378 = int_to_ptr.hbm [resolvable:$true] %s1377
          %1383 = dma.vmem_to_hbm [thread:$0]  %s1376, 1024, %s1378, %s1356, 256, 256, 16
        $region48: #{tpu_custom_call.1} parent=31 // pred_fallthru
          _
        // Predicated region
        $region49: #{tpu_custom_call.1} parent=31 // pred_check
          %p1384 = pneg %p170
        $region50: #{tpu_custom_call.1} parent=31 // pred_check_branch
          %1386 = sbr.rel (%p1384) target = $region52
        $region51: #{tpu_custom_call.1} parent=31 // pred_region
          %s1387 = smul.u32 2, %s33
          %1389 = vsyncadd %s1361, 0
          %s1390 = smul.addr %s32, 2
          %s1391 = sadd.s32 %s1387, %s1390
          %s1392 = scalar_lea.hbm %s4, %s1391
          %s1394 = sshll.u32 %s1364, 4
          %s1395 = int_to_ptr.vmem [resolvable:$true] %s1394
          %s1396 = sshll.u32 %s1392, 4
          %s1397 = int_to_ptr.hbm [resolvable:$true] %s1396
          %1399 = dma.vmem_to_hbm [thread:$0]  %s1395, 32, %s1397, %s1361
        $region52: #{tpu_custom_call.1} parent=31 // pred_fallthru
          _
      $region32: #{tpu_custom_call.1} parent=5 // pred_fallthru
        _
      %p1400 = scmp.le.s32.totalorder 2, %s23
      // Predicated region
      $region53: #{tpu_custom_call.1} parent=5 // pred_check
        %p1401 = pneg %p1400
      $region54: #{tpu_custom_call.1} parent=5 // pred_check_branch
        %1403 = sbr.rel (%p1401) target = $region56
      $region55: #{tpu_custom_call.1} parent=5 // pred_region
        %s1404 = ssub.s32 %s23, 2
        // Predicated region
        $region57: #{tpu_custom_call.1} parent=55 // pred_check
          %p1405 = pneg %p148
        $region58: #{tpu_custom_call.1} parent=55 // pred_check_branch
          %1407 = sbr.rel (%p1405) target = $region60
        $region59: #{tpu_custom_call.1} parent=55 // pred_region
          %s1408 = sand.u32 %s133, 1
          %s1409 = scalar_lea.sflag [#allocation4], %s1408
          %s1410 = sand.u32 %s133, 1
          %s1411 = smul.addr %s1410, 64
          %s1412 = scalar_lea.vmem [#allocation8], %s1411
          %1414 = dma.done %s1409, 1024
        $region60: #{tpu_custom_call.1} parent=55 // pred_fallthru
          _
        // Predicated region
        $region61: #{tpu_custom_call.1} parent=55 // pred_check
          %p1415 = pneg %p176
        $region62: #{tpu_custom_call.1} parent=55 // pred_check_branch
          %1417 = sbr.rel (%p1415) target = $region64
        $region63: #{tpu_custom_call.1} parent=55 // pred_region
          %s1418 = sand.u32 %s161, 1
          %s1419 = scalar_lea.sflag [#allocation10], %s1418
          %s1420 = sand.u32 %s161, 1
          %s1421 = smul.addr %s1420, 2
          %s1422 = scalar_lea.vmem [#allocation9], %s1421
          %1424 = dma.done %s1419, 32
        $region64: #{tpu_custom_call.1} parent=55 // pred_fallthru
          _
      $region56: #{tpu_custom_call.1} parent=5 // pred_fallthru
        _
    $region6: #{tpu_custom_call.1} parent=1 // loop_footer
      %s27 = sadd.s32 1, %s23
    $region7: #{tpu_custom_call.1} parent=1 // loop_footer_branch
      %22 = sbr.rel target = $region3
    $region8: #{tpu_custom_call.1} parent=1 // loop_exit
      _
    %1425 = vsyncpa [#allocation3], 1
    %s1426 = scalar_lea.sflag [#allocation3], 1
    %1427 = vsyncpa %s1426, 1
    %1428 = vsyncpa [#allocation6], 1
    %s1429 = scalar_lea.sflag [#allocation6], 1
    %1430 = vsyncpa %s1429, 1
    %1431 = vsyncpa [#allocation4], 1
    %s1432 = scalar_lea.sflag [#allocation4], 1
    %1433 = vsyncpa %s1432, 1
    %1434 = vsyncpa [#allocation10], 1
    %s1435 = scalar_lea.sflag [#allocation10], 1
    %1436 = vsyncpa %s1435, 1

</llo_original>
